<compile_context>
chip_gen: v5e
topology: v5e:2x2
jax: 0.10.0
libtpu: 0.0.40
codegen_flags: <defaults>
</compile_context>

<pallas_src>
import functools

import jax
import jax.numpy as jnp
from jax.experimental import pallas as pl
from jax.experimental.pallas import tpu as pltpu


_FFN_CHUNK = 256  # rows of S per FFN sub-step; bounds the (chunk, F) intermediate.


def _layer_norm(x, gamma, beta, eps=1e-5):
    # LayerNorm over the last (hidden) dim, PyTorch default eps, f32 path.
    mean = jnp.mean(x, axis=-1, keepdims=True)
    var = jnp.mean((x - mean) ** 2, axis=-1, keepdims=True)
    return (x - mean) * jax.lax.rsqrt(var + eps) * gamma + beta


def encoder_block_kernel(num_heads,
                         valid_lens_ref,          # scalar prefetch (SMEM), (B,) int32
                         x_ref,                   # (1, S, H) f32
                         wq_ref, bq_ref, wk_ref, bk_ref, wv_ref, bv_ref,
                         wo_ref, bo_ref,
                         g1_ref, be1_ref,
                         w1_ref, b1_ref, w2_ref, b2_ref,
                         g2_ref, be2_ref,
                         o_ref):                  # (1, S, H) f32
    b = pl.program_id(0)
    vl = valid_lens_ref[b]                        # scalar int32 valid length

    x = x_ref[0]                                  # (S, H) f32
    S, H = x.shape
    d = H // num_heads
    x_bf = x.astype(jnp.bfloat16)                 # bf16 MXU operands, f32 accumulation

    # key mask: key_index < valid_len; identical for every query row / head of
    # this batch element, so build it once as a (1, S) row and broadcast.
    key_idx = jax.lax.broadcasted_iota(jnp.int32, (1, S), 1)
    key_mask = key_idx < vl                       # (1, S) bool
    neg_big = jnp.float32(-1e6)                   # d2l masked_softmax fill value
    scale = jnp.float32(1.0 / (float(d) ** 0.5))

    # --- multi-head self-attention, head-major weights (no lane slices / concat) ---
    attn = jnp.zeros((S, H), jnp.float32)
    for h in range(num_heads):                    # static unroll; slices hit leading dim only
        qh = jnp.dot(x_bf, wq_ref[h], preferred_element_type=jnp.float32) + bq_ref[h]
        kh = jnp.dot(x_bf, wk_ref[h], preferred_element_type=jnp.float32) + bk_ref[h]
        vh = jnp.dot(x_bf, wv_ref[h], preferred_element_type=jnp.float32) + bv_ref[h]
        # scores = qh @ kh.T without materializing a transpose
        scores = jax.lax.dot_general(
            qh.astype(jnp.bfloat16), kh.astype(jnp.bfloat16),
            (((1,), (1,)), ((), ())),
            preferred_element_type=jnp.float32) * scale
        scores = jnp.where(key_mask, scores, neg_big)     # (1,S) mask broadcasts over rows
        m = jnp.max(scores, axis=-1, keepdims=True)
        e = jnp.exp(scores - m)
        p = e * pl.reciprocal(jnp.sum(e, axis=-1, keepdims=True), approx=True)
        pv = jnp.dot(p.astype(jnp.bfloat16), vh.astype(jnp.bfloat16),
                     preferred_element_type=jnp.float32)
        # fold W_o: concat(head_0..head_{n-1}) @ W_o == sum_h head_h @ W_o[h*d:(h+1)*d, :]
        attn = attn + jnp.dot(pv.astype(jnp.bfloat16), wo_ref[h],
                              preferred_element_type=jnp.float32)
    attn = attn + bo_ref[...]

    # --- AddNorm 1 (dropout == identity at inference), f32 elementwise path ---
    y = _layer_norm(x + attn, g1_ref[...], be1_ref[...])
    y_bf = y.astype(jnp.bfloat16)

    # --- position-wise FFN + AddNorm 2, chunked over S (bounds (chunk, F) live set) ---
    for c0 in range(0, S, _FFN_CHUNK):            # static chunk starts
        csz = min(_FFN_CHUNK, S - c0)
        yc = y_bf[c0:c0 + csz]
        h1 = jnp.maximum(
            jnp.dot(yc, w1_ref[...], preferred_element_type=jnp.float32) + b1_ref[...],
            0.0)
        ffn = jnp.dot(h1.astype(jnp.bfloat16), w2_ref[...],
                      preferred_element_type=jnp.float32) + b2_ref[...]
        o_ref[0, pl.ds(c0, csz), :] = _layer_norm(
            y[c0:c0 + csz] + ffn, g2_ref[...], be2_ref[...]).astype(o_ref.dtype)


def _head_major(p, num_heads):
    """Reshape/cast d2l-layout params to the kernel's head-major, bf16-weight layout."""
    H = p['wq'].shape[0]
    d = H // num_heads
    bf = jnp.bfloat16

    def qkv_w(w):      # (H, H) -> (nh, H, d); block h == w[:, h*d:(h+1)*d]
        return w.reshape(H, num_heads, d).transpose(1, 0, 2).astype(bf)

    def qkv_b(bias):   # (1, H) -> (nh, 1, d)
        return bias.reshape(num_heads, d)[:, None, :].astype(jnp.float32)

    return dict(
        wq=qkv_w(p['wq']), bq=qkv_b(p['bq']),
        wk=qkv_w(p['wk']), bk=qkv_b(p['bk']),
        wv=qkv_w(p['wv']), bv=qkv_b(p['bv']),
        wo=p['wo'].reshape(num_heads, d, H).astype(bf),   # block h == wo[h*d:(h+1)*d, :]
        bo=p['bo'].astype(jnp.float32),
        g1=p['g1'].astype(jnp.float32), be1=p['be1'].astype(jnp.float32),
        w1=p['w1'].astype(bf), b1=p['b1'].astype(jnp.float32),
        w2=p['w2'].astype(bf), b2=p['b2'].astype(jnp.float32),
        g2=p['g2'].astype(jnp.float32), be2=p['be2'].astype(jnp.float32),
    )


def _encoder_block(x, valid_lens, hp, num_heads):
    B, S, H = x.shape
    F = hp['w1'].shape[-1]
    kernel = functools.partial(encoder_block_kernel, num_heads)

    weight_args = [hp['wq'], hp['bq'], hp['wk'], hp['bk'], hp['wv'], hp['bv'],
                   hp['wo'], hp['bo'], hp['g1'], hp['be1'],
                   hp['w1'], hp['b1'], hp['w2'], hp['b2'], hp['g2'], hp['be2']]

    # x is pipelined per batch element; weights are whole-array, single-copy VMEM
    # residents (constant across grid steps -> no double buffering of constants).
    in_specs = [pl.BlockSpec((1, S, H), lambda b, vl: (b, 0, 0))]
    in_specs += [pl.BlockSpec(memory_space=pltpu.MemorySpace.VMEM)
                 for _ in weight_args]

    # Explicit VMEM budget: single-copy weights + double-buffered x/o tiles +
    # attention/FFN working set, 2x headroom, clamped to v7x's 64 MiB ceiling.
    weight_bytes = sum(int(w.size) * w.dtype.itemsize for w in weight_args)
    tile_bytes = 2 * 2 * S * H * 4                     # double-buffered in/out tiles (f32)
    work_bytes = 4 * (min(S, _FFN_CHUNK) * F + 3 * S * H + S * S)
    vmem_limit = int(min(64 * 1024 * 1024,
                         max(8 * 1024 * 1024,
                             2 * (weight_bytes + tile_bytes + work_bytes))))

    return pl.pallas_call(
        kernel,
        out_shape=jax.ShapeDtypeStruct((B, S, H), x.dtype),
        grid_spec=pltpu.PrefetchScalarGridSpec(
            num_scalar_prefetch=1,
            grid=(B,),
            in_specs=in_specs,
            out_specs=pl.BlockSpec((1, S, H), lambda b, vl: (b, 0, 0)),
        ),
        compiler_params=pltpu.CompilerParams(
            dimension_semantics=("parallel",),   # batch steps are independent
            vmem_limit_bytes=vmem_limit,
        ),
    )(valid_lens, x, *weight_args)


def bert_encoder_forward(X, segments, valid_lens, params, num_heads):
    # Matches the reference forward: `segments` is accepted but unused.
    del segments
    out = X
    for layer_params in params:
        out = _encoder_block(out, valid_lens, _head_major(layer_params, num_heads),
                             num_heads)
    return out


def init_params(key, num_layers, num_hiddens, ffn_num_hiddens):
    """Deterministic synthetic parameters (shapes follow d2l.EncoderBlock)."""
    H, F = num_hiddens, ffn_num_hiddens
    params = []
    for i in range(num_layers):
        ks = jax.random.split(jax.random.fold_in(key, i), 10)

        def lin(k, n_in, n_out):
            return (jax.random.normal(k, (n_in, n_out), jnp.float32) * 0.02,
                    jnp.zeros((1, n_out), jnp.float32))

        wq, bq = lin(ks[0], H, H)
        wk, bk = lin(ks[1], H, H)
        wv, bv = lin(ks[2], H, H)
        wo, bo = lin(ks[3], H, H)
        w1, b1 = lin(ks[4], H, F)
        w2, b2 = lin(ks[5], F, H)
        params.append(dict(
            wq=wq, bq=bq, wk=wk, bk=bk, wv=wv, bv=bv, wo=wo, bo=bo,
            g1=jnp.ones((1, H), jnp.float32), be1=jnp.zeros((1, H), jnp.float32),
            w1=w1, b1=b1, w2=w2, b2=b2,
            g2=jnp.ones((1, H), jnp.float32), be2=jnp.zeros((1, H), jnp.float32),
        ))
    return params


if __name__ == "__main__":
    key = jax.random.PRNGKey(0)
    kx, kp = jax.random.split(key)

    # Small shapes consistent with the module's forward (X already embedded).
    B, S = 2, 8
    num_hiddens = 32
    ffn_num_hiddens = 64
    num_heads = 2
    num_layers = 2

    X = jax.random.normal(kx, (B, S, num_hiddens), jnp.float32)
    segments = jnp.zeros((B, S), jnp.int32)       # unused by forward, as in reference
    valid_lens = jnp.array([8, 5], dtype=jnp.int32)

    params = init_params(kp, num_layers, num_hiddens, ffn_num_hiddens)

    out = bert_encoder_forward(X, segments, valid_lens, params, num_heads)
    jax.block_until_ready(out)
    assert out.shape == (B, S, num_hiddens)
    print("KERNEL_OK")
</pallas_src>

<mosaic_0001>
module attributes {stable_mosaic.version = 11 : i64} {
  func.func @encoder_block_kernel(%arg0: i32, %arg1: memref<2xi32, #tpu.memory_space<smem>>, %arg2: memref<1x8x32xf32, #tpu.memory_space<vmem>>, %arg3: memref<2x32x16xbf16, #tpu.memory_space<vmem>>, %arg4: memref<2x1x16xf32, #tpu.memory_space<vmem>>, %arg5: memref<2x32x16xbf16, #tpu.memory_space<vmem>>, %arg6: memref<2x1x16xf32, #tpu.memory_space<vmem>>, %arg7: memref<2x32x16xbf16, #tpu.memory_space<vmem>>, %arg8: memref<2x1x16xf32, #tpu.memory_space<vmem>>, %arg9: memref<2x16x32xbf16, #tpu.memory_space<vmem>>, %arg10: memref<1x32xf32, #tpu.memory_space<vmem>>, %arg11: memref<1x32xf32, #tpu.memory_space<vmem>>, %arg12: memref<1x32xf32, #tpu.memory_space<vmem>>, %arg13: memref<32x64xbf16, #tpu.memory_space<vmem>>, %arg14: memref<1x64xf32, #tpu.memory_space<vmem>>, %arg15: memref<64x32xbf16, #tpu.memory_space<vmem>>, %arg16: memref<1x32xf32, #tpu.memory_space<vmem>>, %arg17: memref<1x32xf32, #tpu.memory_space<vmem>>, %arg18: memref<1x32xf32, #tpu.memory_space<vmem>>, %arg19: memref<1x8x32xf32, #tpu.memory_space<vmem>>) attributes {dimension_semantics = [#tpu.dimension_semantics<parallel>], iteration_bounds = array<i64: 2>, scalar_prefetch = 1 : i64, scratch_operands = 0 : i64, tpu.core_type = #tpu.core_type<tc>, window_params = [{transform_indices = @transform_0, window_bounds = array<i64: 1, 8, 32>}, {pipeline_mode = #tpu.pipeline_mode<synchronous>, transform_indices = @transform_1, window_bounds = array<i64: 2, 32, 16>}, {pipeline_mode = #tpu.pipeline_mode<synchronous>, transform_indices = @transform_2, window_bounds = array<i64: 2, 1, 16>}, {pipeline_mode = #tpu.pipeline_mode<synchronous>, transform_indices = @transform_3, window_bounds = array<i64: 2, 32, 16>}, {pipeline_mode = #tpu.pipeline_mode<synchronous>, transform_indices = @transform_4, window_bounds = array<i64: 2, 1, 16>}, {pipeline_mode = #tpu.pipeline_mode<synchronous>, transform_indices = @transform_5, window_bounds = array<i64: 2, 32, 16>}, {pipeline_mode = #tpu.pipeline_mode<synchronous>, transform_indices = @transform_6, window_bounds = array<i64: 2, 1, 16>}, {pipeline_mode = #tpu.pipeline_mode<synchronous>, transform_indices = @transform_7, window_bounds = array<i64: 2, 16, 32>}, {pipeline_mode = #tpu.pipeline_mode<synchronous>, transform_indices = @transform_8, window_bounds = array<i64: 1, 32>}, {pipeline_mode = #tpu.pipeline_mode<synchronous>, transform_indices = @transform_9, window_bounds = array<i64: 1, 32>}, {pipeline_mode = #tpu.pipeline_mode<synchronous>, transform_indices = @transform_10, window_bounds = array<i64: 1, 32>}, {pipeline_mode = #tpu.pipeline_mode<synchronous>, transform_indices = @transform_11, window_bounds = array<i64: 32, 64>}, {pipeline_mode = #tpu.pipeline_mode<synchronous>, transform_indices = @transform_12, window_bounds = array<i64: 1, 64>}, {pipeline_mode = #tpu.pipeline_mode<synchronous>, transform_indices = @transform_13, window_bounds = array<i64: 64, 32>}, {pipeline_mode = #tpu.pipeline_mode<synchronous>, transform_indices = @transform_14, window_bounds = array<i64: 1, 32>}, {pipeline_mode = #tpu.pipeline_mode<synchronous>, transform_indices = @transform_15, window_bounds = array<i64: 1, 32>}, {pipeline_mode = #tpu.pipeline_mode<synchronous>, transform_indices = @transform_16, window_bounds = array<i64: 1, 32>}, {transform_indices = @transform_17, window_bounds = array<i64: 1, 8, 32>}]} {
    %0 = arith.index_cast %arg0 : i32 to index
    %1 = memref.load %arg1[%0] : memref<2xi32, #tpu.memory_space<smem>>
    %c0 = arith.constant 0 : index
    %c0_0 = arith.constant 0 : index
    %c0_1 = arith.constant 0 : index
    %2 = vector.load %arg2[%c0, %c0_0, %c0_1] : memref<1x8x32xf32, #tpu.memory_space<vmem>>, vector<1x8x32xf32>
    %3 = vector.shape_cast %2 : vector<1x8x32xf32> to vector<8x32xf32>
    %4 = arith.truncf %3 : vector<8x32xf32> to vector<8x32xbf16>
    %5 = tpu.iota {dimensions = array<i32: 1>} : vector<1x8xi32>
    %6 = vector.broadcast %1 : i32 to vector<1x8xi32>
    %7 = arith.cmpi slt, %5, %6 : vector<1x8xi32>
    %cst = arith.constant 0.000000e+00 : f32
    %8 = vector.broadcast %cst : f32 to vector<8x32xf32>
    %c0_2 = arith.constant 0 : index
    %c0_3 = arith.constant 0 : index
    %c0_4 = arith.constant 0 : index
    %9 = vector.load %arg3[%c0_2, %c0_3, %c0_4] : memref<2x32x16xbf16, #tpu.memory_space<vmem>>, vector<1x32x16xbf16>
    %10 = vector.shape_cast %9 : vector<1x32x16xbf16> to vector<32x16xbf16>
    %cst_5 = arith.constant dense<0.000000e+00> : vector<8x16xf32>
    %11 = tpu.matmul %4, %10, %cst_5 {dimension_numbers = #tpu.dot_dimension_numbers<[1], [0], [0], [1], [0, 0, 1, 1], [], []>} : vector<8x32xbf16>, vector<32x16xbf16>, vector<8x16xf32> -> vector<8x16xf32>
    %c0_6 = arith.constant 0 : index
    %c0_7 = arith.constant 0 : index
    %c0_8 = arith.constant 0 : index
    %12 = vector.load %arg4[%c0_6, %c0_7, %c0_8] : memref<2x1x16xf32, #tpu.memory_space<vmem>>, vector<1x1x16xf32>
    %13 = vector.shape_cast %12 : vector<1x1x16xf32> to vector<1x16xf32>
    %14 = vector.broadcast %13 : vector<1x16xf32> to vector<8x16xf32>
    %15 = arith.addf %11, %14 : vector<8x16xf32>
    %c0_9 = arith.constant 0 : index
    %c0_10 = arith.constant 0 : index
    %c0_11 = arith.constant 0 : index
    %16 = vector.load %arg5[%c0_9, %c0_10, %c0_11] : memref<2x32x16xbf16, #tpu.memory_space<vmem>>, vector<1x32x16xbf16>
    %17 = vector.shape_cast %16 : vector<1x32x16xbf16> to vector<32x16xbf16>
    %cst_12 = arith.constant dense<0.000000e+00> : vector<8x16xf32>
    %18 = tpu.matmul %4, %17, %cst_12 {dimension_numbers = #tpu.dot_dimension_numbers<[1], [0], [0], [1], [0, 0, 1, 1], [], []>} : vector<8x32xbf16>, vector<32x16xbf16>, vector<8x16xf32> -> vector<8x16xf32>
    %c0_13 = arith.constant 0 : index
    %c0_14 = arith.constant 0 : index
    %c0_15 = arith.constant 0 : index
    %19 = vector.load %arg6[%c0_13, %c0_14, %c0_15] : memref<2x1x16xf32, #tpu.memory_space<vmem>>, vector<1x1x16xf32>
    %20 = vector.shape_cast %19 : vector<1x1x16xf32> to vector<1x16xf32>
    %21 = vector.broadcast %20 : vector<1x16xf32> to vector<8x16xf32>
    %22 = arith.addf %18, %21 : vector<8x16xf32>
    %c0_16 = arith.constant 0 : index
    %c0_17 = arith.constant 0 : index
    %c0_18 = arith.constant 0 : index
    %23 = vector.load %arg7[%c0_16, %c0_17, %c0_18] : memref<2x32x16xbf16, #tpu.memory_space<vmem>>, vector<1x32x16xbf16>
    %24 = vector.shape_cast %23 : vector<1x32x16xbf16> to vector<32x16xbf16>
    %cst_19 = arith.constant dense<0.000000e+00> : vector<8x16xf32>
    %25 = tpu.matmul %4, %24, %cst_19 {dimension_numbers = #tpu.dot_dimension_numbers<[1], [0], [0], [1], [0, 0, 1, 1], [], []>} : vector<8x32xbf16>, vector<32x16xbf16>, vector<8x16xf32> -> vector<8x16xf32>
    %c0_20 = arith.constant 0 : index
    %c0_21 = arith.constant 0 : index
    %c0_22 = arith.constant 0 : index
    %26 = vector.load %arg8[%c0_20, %c0_21, %c0_22] : memref<2x1x16xf32, #tpu.memory_space<vmem>>, vector<1x1x16xf32>
    %27 = vector.shape_cast %26 : vector<1x1x16xf32> to vector<1x16xf32>
    %28 = vector.broadcast %27 : vector<1x16xf32> to vector<8x16xf32>
    %29 = arith.addf %25, %28 : vector<8x16xf32>
    %30 = arith.truncf %15 : vector<8x16xf32> to vector<8x16xbf16>
    %31 = arith.truncf %22 : vector<8x16xf32> to vector<8x16xbf16>
    %cst_23 = arith.constant dense<0.000000e+00> : vector<8x8xf32>
    %32 = tpu.matmul %30, %31, %cst_23 {dimension_numbers = #tpu.dot_dimension_numbers<[1], [1], [0], [0], [0, 0, 1, 0], [], []>} : vector<8x16xbf16>, vector<8x16xbf16>, vector<8x8xf32> -> vector<8x8xf32>
    %cst_24 = arith.constant 2.500000e-01 : f32
    %33 = vector.broadcast %cst_24 : f32 to vector<8x8xf32>
    %34 = arith.mulf %32, %33 : vector<8x8xf32>
    %cst_25 = arith.constant -1.000000e+06 : f32
    %35 = vector.shape_cast %7 : vector<1x8xi1> to vector<1x8xi1>
    %36 = vector.broadcast %35 : vector<1x8xi1> to vector<8x8xi1>
    %37 = vector.broadcast %cst_25 : f32 to vector<8x8xf32>
    %38 = arith.select %36, %34, %37 : vector<8x8xi1>, vector<8x8xf32>
    %cst_26 = arith.constant dense<0xFF800000> : vector<8xf32>
    %39 = vector.multi_reduction <maximumf>, %38, %cst_26 [1] : vector<8x8xf32> to vector<8xf32>
    %40 = vector.shape_cast %39 : vector<8xf32> to vector<8x1xf32>
    %41 = vector.broadcast %40 : vector<8x1xf32> to vector<8x8xf32>
    %42 = arith.subf %38, %41 : vector<8x8xf32>
    %43 = math.exp %42 : vector<8x8xf32>
    %cst_27 = arith.constant dense<0.000000e+00> : vector<8xf32>
    %44 = vector.multi_reduction <add>, %43, %cst_27 [1] : vector<8x8xf32> to vector<8xf32>
    %45 = vector.shape_cast %44 : vector<8xf32> to vector<8x1xf32>
    %46 = tpu.reciprocal %45 {approx = true} : vector<8x1xf32> -> vector<8x1xf32>
    %47 = vector.broadcast %46 : vector<8x1xf32> to vector<8x8xf32>
    %48 = arith.mulf %43, %47 : vector<8x8xf32>
    %49 = arith.truncf %48 : vector<8x8xf32> to vector<8x8xbf16>
    %50 = arith.truncf %29 : vector<8x16xf32> to vector<8x16xbf16>
    %cst_28 = arith.constant dense<0.000000e+00> : vector<8x16xf32>
    %51 = tpu.matmul %49, %50, %cst_28 {dimension_numbers = #tpu.dot_dimension_numbers<[1], [0], [0], [1], [0, 0, 1, 1], [], []>} : vector<8x8xbf16>, vector<8x16xbf16>, vector<8x16xf32> -> vector<8x16xf32>
    %52 = arith.truncf %51 : vector<8x16xf32> to vector<8x16xbf16>
    %c0_29 = arith.constant 0 : index
    %c0_30 = arith.constant 0 : index
    %c0_31 = arith.constant 0 : index
    %53 = vector.load %arg9[%c0_29, %c0_30, %c0_31] : memref<2x16x32xbf16, #tpu.memory_space<vmem>>, vector<1x16x32xbf16>
    %54 = vector.shape_cast %53 : vector<1x16x32xbf16> to vector<16x32xbf16>
    %cst_32 = arith.constant dense<0.000000e+00> : vector<8x32xf32>
    %55 = tpu.matmul %52, %54, %cst_32 {dimension_numbers = #tpu.dot_dimension_numbers<[1], [0], [0], [1], [0, 0, 1, 1], [], []>} : vector<8x16xbf16>, vector<16x32xbf16>, vector<8x32xf32> -> vector<8x32xf32>
    %56 = arith.addf %8, %55 : vector<8x32xf32>
    %c1 = arith.constant 1 : index
    %c0_33 = arith.constant 0 : index
    %c0_34 = arith.constant 0 : index
    %57 = vector.load %arg3[%c1, %c0_33, %c0_34] : memref<2x32x16xbf16, #tpu.memory_space<vmem>>, vector<1x32x16xbf16>
    %58 = vector.shape_cast %57 : vector<1x32x16xbf16> to vector<32x16xbf16>
    %cst_35 = arith.constant dense<0.000000e+00> : vector<8x16xf32>
    %59 = tpu.matmul %4, %58, %cst_35 {dimension_numbers = #tpu.dot_dimension_numbers<[1], [0], [0], [1], [0, 0, 1, 1], [], []>} : vector<8x32xbf16>, vector<32x16xbf16>, vector<8x16xf32> -> vector<8x16xf32>
    %c1_36 = arith.constant 1 : index
    %c0_37 = arith.constant 0 : index
    %c0_38 = arith.constant 0 : index
    %60 = vector.load %arg4[%c1_36, %c0_37, %c0_38] : memref<2x1x16xf32, #tpu.memory_space<vmem>>, vector<1x1x16xf32>
    %61 = vector.shape_cast %60 : vector<1x1x16xf32> to vector<1x16xf32>
    %62 = vector.broadcast %61 : vector<1x16xf32> to vector<8x16xf32>
    %63 = arith.addf %59, %62 : vector<8x16xf32>
    %c1_39 = arith.constant 1 : index
    %c0_40 = arith.constant 0 : index
    %c0_41 = arith.constant 0 : index
    %64 = vector.load %arg5[%c1_39, %c0_40, %c0_41] : memref<2x32x16xbf16, #tpu.memory_space<vmem>>, vector<1x32x16xbf16>
    %65 = vector.shape_cast %64 : vector<1x32x16xbf16> to vector<32x16xbf16>
    %cst_42 = arith.constant dense<0.000000e+00> : vector<8x16xf32>
    %66 = tpu.matmul %4, %65, %cst_42 {dimension_numbers = #tpu.dot_dimension_numbers<[1], [0], [0], [1], [0, 0, 1, 1], [], []>} : vector<8x32xbf16>, vector<32x16xbf16>, vector<8x16xf32> -> vector<8x16xf32>
    %c1_43 = arith.constant 1 : index
    %c0_44 = arith.constant 0 : index
    %c0_45 = arith.constant 0 : index
    %67 = vector.load %arg6[%c1_43, %c0_44, %c0_45] : memref<2x1x16xf32, #tpu.memory_space<vmem>>, vector<1x1x16xf32>
    %68 = vector.shape_cast %67 : vector<1x1x16xf32> to vector<1x16xf32>
    %69 = vector.broadcast %68 : vector<1x16xf32> to vector<8x16xf32>
    %70 = arith.addf %66, %69 : vector<8x16xf32>
    %c1_46 = arith.constant 1 : index
    %c0_47 = arith.constant 0 : index
    %c0_48 = arith.constant 0 : index
    %71 = vector.load %arg7[%c1_46, %c0_47, %c0_48] : memref<2x32x16xbf16, #tpu.memory_space<vmem>>, vector<1x32x16xbf16>
    %72 = vector.shape_cast %71 : vector<1x32x16xbf16> to vector<32x16xbf16>
    %cst_49 = arith.constant dense<0.000000e+00> : vector<8x16xf32>
    %73 = tpu.matmul %4, %72, %cst_49 {dimension_numbers = #tpu.dot_dimension_numbers<[1], [0], [0], [1], [0, 0, 1, 1], [], []>} : vector<8x32xbf16>, vector<32x16xbf16>, vector<8x16xf32> -> vector<8x16xf32>
    %c1_50 = arith.constant 1 : index
    %c0_51 = arith.constant 0 : index
    %c0_52 = arith.constant 0 : index
    %74 = vector.load %arg8[%c1_50, %c0_51, %c0_52] : memref<2x1x16xf32, #tpu.memory_space<vmem>>, vector<1x1x16xf32>
    %75 = vector.shape_cast %74 : vector<1x1x16xf32> to vector<1x16xf32>
    %76 = vector.broadcast %75 : vector<1x16xf32> to vector<8x16xf32>
    %77 = arith.addf %73, %76 : vector<8x16xf32>
    %78 = arith.truncf %63 : vector<8x16xf32> to vector<8x16xbf16>
    %79 = arith.truncf %70 : vector<8x16xf32> to vector<8x16xbf16>
    %cst_53 = arith.constant dense<0.000000e+00> : vector<8x8xf32>
    %80 = tpu.matmul %78, %79, %cst_53 {dimension_numbers = #tpu.dot_dimension_numbers<[1], [1], [0], [0], [0, 0, 1, 0], [], []>} : vector<8x16xbf16>, vector<8x16xbf16>, vector<8x8xf32> -> vector<8x8xf32>
    %cst_54 = arith.constant 2.500000e-01 : f32
    %81 = vector.broadcast %cst_54 : f32 to vector<8x8xf32>
    %82 = arith.mulf %80, %81 : vector<8x8xf32>
    %cst_55 = arith.constant -1.000000e+06 : f32
    %83 = vector.shape_cast %7 : vector<1x8xi1> to vector<1x8xi1>
    %84 = vector.broadcast %83 : vector<1x8xi1> to vector<8x8xi1>
    %85 = vector.broadcast %cst_55 : f32 to vector<8x8xf32>
    %86 = arith.select %84, %82, %85 : vector<8x8xi1>, vector<8x8xf32>
    %cst_56 = arith.constant dense<0xFF800000> : vector<8xf32>
    %87 = vector.multi_reduction <maximumf>, %86, %cst_56 [1] : vector<8x8xf32> to vector<8xf32>
    %88 = vector.shape_cast %87 : vector<8xf32> to vector<8x1xf32>
    %89 = vector.broadcast %88 : vector<8x1xf32> to vector<8x8xf32>
    %90 = arith.subf %86, %89 : vector<8x8xf32>
    %91 = math.exp %90 : vector<8x8xf32>
    %cst_57 = arith.constant dense<0.000000e+00> : vector<8xf32>
    %92 = vector.multi_reduction <add>, %91, %cst_57 [1] : vector<8x8xf32> to vector<8xf32>
    %93 = vector.shape_cast %92 : vector<8xf32> to vector<8x1xf32>
    %94 = tpu.reciprocal %93 {approx = true} : vector<8x1xf32> -> vector<8x1xf32>
    %95 = vector.broadcast %94 : vector<8x1xf32> to vector<8x8xf32>
    %96 = arith.mulf %91, %95 : vector<8x8xf32>
    %97 = arith.truncf %96 : vector<8x8xf32> to vector<8x8xbf16>
    %98 = arith.truncf %77 : vector<8x16xf32> to vector<8x16xbf16>
    %cst_58 = arith.constant dense<0.000000e+00> : vector<8x16xf32>
    %99 = tpu.matmul %97, %98, %cst_58 {dimension_numbers = #tpu.dot_dimension_numbers<[1], [0], [0], [1], [0, 0, 1, 1], [], []>} : vector<8x8xbf16>, vector<8x16xbf16>, vector<8x16xf32> -> vector<8x16xf32>
    %100 = arith.truncf %99 : vector<8x16xf32> to vector<8x16xbf16>
    %c1_59 = arith.constant 1 : index
    %c0_60 = arith.constant 0 : index
    %c0_61 = arith.constant 0 : index
    %101 = vector.load %arg9[%c1_59, %c0_60, %c0_61] : memref<2x16x32xbf16, #tpu.memory_space<vmem>>, vector<1x16x32xbf16>
    %102 = vector.shape_cast %101 : vector<1x16x32xbf16> to vector<16x32xbf16>
    %cst_62 = arith.constant dense<0.000000e+00> : vector<8x32xf32>
    %103 = tpu.matmul %100, %102, %cst_62 {dimension_numbers = #tpu.dot_dimension_numbers<[1], [0], [0], [1], [0, 0, 1, 1], [], []>} : vector<8x16xbf16>, vector<16x32xbf16>, vector<8x32xf32> -> vector<8x32xf32>
    %104 = arith.addf %56, %103 : vector<8x32xf32>
    %c0_63 = arith.constant 0 : index
    %c0_64 = arith.constant 0 : index
    %105 = vector.load %arg10[%c0_63, %c0_64] : memref<1x32xf32, #tpu.memory_space<vmem>>, vector<1x32xf32>
    %106 = vector.broadcast %105 : vector<1x32xf32> to vector<8x32xf32>
    %107 = arith.addf %104, %106 : vector<8x32xf32>
    %108 = arith.addf %3, %107 : vector<8x32xf32>
    %c0_65 = arith.constant 0 : index
    %c0_66 = arith.constant 0 : index
    %109 = vector.load %arg11[%c0_65, %c0_66] : memref<1x32xf32, #tpu.memory_space<vmem>>, vector<1x32xf32>
    %c0_67 = arith.constant 0 : index
    %c0_68 = arith.constant 0 : index
    %110 = vector.load %arg12[%c0_67, %c0_68] : memref<1x32xf32, #tpu.memory_space<vmem>>, vector<1x32xf32>
    %cst_69 = arith.constant dense<0.000000e+00> : vector<8xf32>
    %111 = vector.multi_reduction <add>, %108, %cst_69 [1] : vector<8x32xf32> to vector<8xf32>
    %112 = vector.shape_cast %111 : vector<8xf32> to vector<8x1xf32>
    %cst_70 = arith.constant 3.200000e+01 : f32
    %113 = vector.broadcast %cst_70 : f32 to vector<8x1xf32>
    %114 = arith.divf %112, %113 : vector<8x1xf32>
    %115 = vector.broadcast %114 : vector<8x1xf32> to vector<8x32xf32>
    %116 = arith.subf %108, %115 : vector<8x32xf32>
    %117 = arith.mulf %116, %116 : vector<8x32xf32>
    %cst_71 = arith.constant dense<0.000000e+00> : vector<8xf32>
    %118 = vector.multi_reduction <add>, %117, %cst_71 [1] : vector<8x32xf32> to vector<8xf32>
    %119 = vector.shape_cast %118 : vector<8xf32> to vector<8x1xf32>
    %cst_72 = arith.constant 3.200000e+01 : f32
    %120 = vector.broadcast %cst_72 : f32 to vector<8x1xf32>
    %121 = arith.divf %119, %120 : vector<8x1xf32>
    %122 = vector.broadcast %114 : vector<8x1xf32> to vector<8x32xf32>
    %123 = arith.subf %108, %122 : vector<8x32xf32>
    %cst_73 = arith.constant 9.99999974E-6 : f32
    %124 = vector.broadcast %cst_73 : f32 to vector<8x1xf32>
    %125 = arith.addf %121, %124 : vector<8x1xf32>
    %126 = math.rsqrt %125 : vector<8x1xf32>
    %127 = vector.broadcast %126 : vector<8x1xf32> to vector<8x32xf32>
    %128 = arith.mulf %123, %127 : vector<8x32xf32>
    %129 = vector.broadcast %109 : vector<1x32xf32> to vector<8x32xf32>
    %130 = arith.mulf %128, %129 : vector<8x32xf32>
    %131 = vector.broadcast %110 : vector<1x32xf32> to vector<8x32xf32>
    %132 = arith.addf %130, %131 : vector<8x32xf32>
    %133 = arith.truncf %132 : vector<8x32xf32> to vector<8x32xbf16>
    %c0_74 = arith.constant 0 : index
    %c0_75 = arith.constant 0 : index
    %134 = vector.load %arg13[%c0_74, %c0_75] : memref<32x64xbf16, #tpu.memory_space<vmem>>, vector<32x64xbf16>
    %cst_76 = arith.constant dense<0.000000e+00> : vector<8x64xf32>
    %135 = tpu.matmul %133, %134, %cst_76 {dimension_numbers = #tpu.dot_dimension_numbers<[1], [0], [0], [1], [0, 0, 1, 1], [], []>} : vector<8x32xbf16>, vector<32x64xbf16>, vector<8x64xf32> -> vector<8x64xf32>
    %c0_77 = arith.constant 0 : index
    %c0_78 = arith.constant 0 : index
    %136 = vector.load %arg14[%c0_77, %c0_78] : memref<1x64xf32, #tpu.memory_space<vmem>>, vector<1x64xf32>
    %137 = vector.broadcast %136 : vector<1x64xf32> to vector<8x64xf32>
    %138 = arith.addf %135, %137 : vector<8x64xf32>
    %cst_79 = arith.constant 0.000000e+00 : f32
    %139 = vector.broadcast %cst_79 : f32 to vector<8x64xf32>
    %140 = arith.maximumf %138, %139 : vector<8x64xf32>
    %141 = arith.truncf %140 : vector<8x64xf32> to vector<8x64xbf16>
    %c0_80 = arith.constant 0 : index
    %c0_81 = arith.constant 0 : index
    %142 = vector.load %arg15[%c0_80, %c0_81] : memref<64x32xbf16, #tpu.memory_space<vmem>>, vector<64x32xbf16>
    %cst_82 = arith.constant dense<0.000000e+00> : vector<8x32xf32>
    %143 = tpu.matmul %141, %142, %cst_82 {dimension_numbers = #tpu.dot_dimension_numbers<[1], [0], [0], [1], [0, 0, 1, 1], [], []>} : vector<8x64xbf16>, vector<64x32xbf16>, vector<8x32xf32> -> vector<8x32xf32>
    %c0_83 = arith.constant 0 : index
    %c0_84 = arith.constant 0 : index
    %144 = vector.load %arg16[%c0_83, %c0_84] : memref<1x32xf32, #tpu.memory_space<vmem>>, vector<1x32xf32>
    %145 = vector.broadcast %144 : vector<1x32xf32> to vector<8x32xf32>
    %146 = arith.addf %143, %145 : vector<8x32xf32>
    %147 = arith.addf %132, %146 : vector<8x32xf32>
    %c0_85 = arith.constant 0 : index
    %c0_86 = arith.constant 0 : index
    %148 = vector.load %arg17[%c0_85, %c0_86] : memref<1x32xf32, #tpu.memory_space<vmem>>, vector<1x32xf32>
    %c0_87 = arith.constant 0 : index
    %c0_88 = arith.constant 0 : index
    %149 = vector.load %arg18[%c0_87, %c0_88] : memref<1x32xf32, #tpu.memory_space<vmem>>, vector<1x32xf32>
    %cst_89 = arith.constant dense<0.000000e+00> : vector<8xf32>
    %150 = vector.multi_reduction <add>, %147, %cst_89 [1] : vector<8x32xf32> to vector<8xf32>
    %151 = vector.shape_cast %150 : vector<8xf32> to vector<8x1xf32>
    %cst_90 = arith.constant 3.200000e+01 : f32
    %152 = vector.broadcast %cst_90 : f32 to vector<8x1xf32>
    %153 = arith.divf %151, %152 : vector<8x1xf32>
    %154 = vector.broadcast %153 : vector<8x1xf32> to vector<8x32xf32>
    %155 = arith.subf %147, %154 : vector<8x32xf32>
    %156 = arith.mulf %155, %155 : vector<8x32xf32>
    %cst_91 = arith.constant dense<0.000000e+00> : vector<8xf32>
    %157 = vector.multi_reduction <add>, %156, %cst_91 [1] : vector<8x32xf32> to vector<8xf32>
    %158 = vector.shape_cast %157 : vector<8xf32> to vector<8x1xf32>
    %cst_92 = arith.constant 3.200000e+01 : f32
    %159 = vector.broadcast %cst_92 : f32 to vector<8x1xf32>
    %160 = arith.divf %158, %159 : vector<8x1xf32>
    %161 = vector.broadcast %153 : vector<8x1xf32> to vector<8x32xf32>
    %162 = arith.subf %147, %161 : vector<8x32xf32>
    %cst_93 = arith.constant 9.99999974E-6 : f32
    %163 = vector.broadcast %cst_93 : f32 to vector<8x1xf32>
    %164 = arith.addf %160, %163 : vector<8x1xf32>
    %165 = math.rsqrt %164 : vector<8x1xf32>
    %166 = vector.broadcast %165 : vector<8x1xf32> to vector<8x32xf32>
    %167 = arith.mulf %162, %166 : vector<8x32xf32>
    %168 = vector.broadcast %148 : vector<1x32xf32> to vector<8x32xf32>
    %169 = arith.mulf %167, %168 : vector<8x32xf32>
    %170 = vector.broadcast %149 : vector<1x32xf32> to vector<8x32xf32>
    %171 = arith.addf %169, %170 : vector<8x32xf32>
    %c0_94 = arith.constant 0 : index
    %c0_95 = arith.constant 0 : index
    %c0_96 = arith.constant 0 : index
    %172 = vector.load %arg19[%c0_94, %c0_95, %c0_96] : memref<1x8x32xf32, #tpu.memory_space<vmem>>, vector<1x8x32xf32>
    %173 = vector.shape_cast %172 : vector<1x8x32xf32> to vector<8x32xf32>
    %174 = vector.shape_cast %171 : vector<8x32xf32> to vector<1x8x32xf32>
    tpu.vector_store %arg19[%c0_94, %c0_95, %c0_96], %174 {strides = array<i32>} : memref<1x8x32xf32, #tpu.memory_space<vmem>>, vector<1x8x32xf32>,
    return
  }
  func.func @transform_0(%arg0: i32, %arg1: memref<2xi32, #tpu.memory_space<smem>>) -> (i32, i32, i32) {
    %c0_i32 = arith.constant 0 : i32
    %c0_i32_0 = arith.constant 0 : i32
    %c0_i32_1 = arith.constant 0 : i32
    return %arg0, %c0_i32, %c0_i32_0 : i32, i32, i32
  }
  func.func @transform_1(%arg0: i32, %arg1: memref<2xi32, #tpu.memory_space<smem>>) -> (i32, i32, i32) {
    %c0_i32 = arith.constant 0 : i32
    %c0_i32_0 = arith.constant 0 : i32
    %c0_i32_1 = arith.constant 0 : i32
    %c0_i32_2 = arith.constant 0 : i32
    return %c0_i32, %c0_i32_0, %c0_i32_1 : i32, i32, i32
  }
  func.func @transform_2(%arg0: i32, %arg1: memref<2xi32, #tpu.memory_space<smem>>) -> (i32, i32, i32) {
    %c0_i32 = arith.constant 0 : i32
    %c0_i32_0 = arith.constant 0 : i32
    %c0_i32_1 = arith.constant 0 : i32
    %c0_i32_2 = arith.constant 0 : i32
    return %c0_i32, %c0_i32_0, %c0_i32_1 : i32, i32, i32
  }
  func.func @transform_3(%arg0: i32, %arg1: memref<2xi32, #tpu.memory_space<smem>>) -> (i32, i32, i32) {
    %c0_i32 = arith.constant 0 : i32
    %c0_i32_0 = arith.constant 0 : i32
    %c0_i32_1 = arith.constant 0 : i32
    %c0_i32_2 = arith.constant 0 : i32
    return %c0_i32, %c0_i32_0, %c0_i32_1 : i32, i32, i32
  }
  func.func @transform_4(%arg0: i32, %arg1: memref<2xi32, #tpu.memory_space<smem>>) -> (i32, i32, i32) {
    %c0_i32 = arith.constant 0 : i32
    %c0_i32_0 = arith.constant 0 : i32
    %c0_i32_1 = arith.constant 0 : i32
    %c0_i32_2 = arith.constant 0 : i32
    return %c0_i32, %c0_i32_0, %c0_i32_1 : i32, i32, i32
  }
  func.func @transform_5(%arg0: i32, %arg1: memref<2xi32, #tpu.memory_space<smem>>) -> (i32, i32, i32) {
    %c0_i32 = arith.constant 0 : i32
    %c0_i32_0 = arith.constant 0 : i32
    %c0_i32_1 = arith.constant 0 : i32
    %c0_i32_2 = arith.constant 0 : i32
    return %c0_i32, %c0_i32_0, %c0_i32_1 : i32, i32, i32
  }
  func.func @transform_6(%arg0: i32, %arg1: memref<2xi32, #tpu.memory_space<smem>>) -> (i32, i32, i32) {
    %c0_i32 = arith.constant 0 : i32
    %c0_i32_0 = arith.constant 0 : i32
    %c0_i32_1 = arith.constant 0 : i32
    %c0_i32_2 = arith.constant 0 : i32
    return %c0_i32, %c0_i32_0, %c0_i32_1 : i32, i32, i32
  }
  func.func @transform_7(%arg0: i32, %arg1: memref<2xi32, #tpu.memory_space<smem>>) -> (i32, i32, i32) {
    %c0_i32 = arith.constant 0 : i32
    %c0_i32_0 = arith.constant 0 : i32
    %c0_i32_1 = arith.constant 0 : i32
    %c0_i32_2 = arith.constant 0 : i32
    return %c0_i32, %c0_i32_0, %c0_i32_1 : i32, i32, i32
  }
  func.func @transform_8(%arg0: i32, %arg1: memref<2xi32, #tpu.memory_space<smem>>) -> (i32, i32) {
    %c0_i32 = arith.constant 0 : i32
    %c0_i32_0 = arith.constant 0 : i32
    %c0_i32_1 = arith.constant 0 : i32
    return %c0_i32, %c0_i32_0 : i32, i32
  }
  func.func @transform_9(%arg0: i32, %arg1: memref<2xi32, #tpu.memory_space<smem>>) -> (i32, i32) {
    %c0_i32 = arith.constant 0 : i32
    %c0_i32_0 = arith.constant 0 : i32
    %c0_i32_1 = arith.constant 0 : i32
    return %c0_i32, %c0_i32_0 : i32, i32
  }
  func.func @transform_10(%arg0: i32, %arg1: memref<2xi32, #tpu.memory_space<smem>>) -> (i32, i32) {
    %c0_i32 = arith.constant 0 : i32
    %c0_i32_0 = arith.constant 0 : i32
    %c0_i32_1 = arith.constant 0 : i32
    return %c0_i32, %c0_i32_0 : i32, i32
  }
  func.func @transform_11(%arg0: i32, %arg1: memref<2xi32, #tpu.memory_space<smem>>) -> (i32, i32) {
    %c0_i32 = arith.constant 0 : i32
    %c0_i32_0 = arith.constant 0 : i32
    %c0_i32_1 = arith.constant 0 : i32
    return %c0_i32, %c0_i32_0 : i32, i32
  }
  func.func @transform_12(%arg0: i32, %arg1: memref<2xi32, #tpu.memory_space<smem>>) -> (i32, i32) {
    %c0_i32 = arith.constant 0 : i32
    %c0_i32_0 = arith.constant 0 : i32
    %c0_i32_1 = arith.constant 0 : i32
    return %c0_i32, %c0_i32_0 : i32, i32
  }
  func.func @transform_13(%arg0: i32, %arg1: memref<2xi32, #tpu.memory_space<smem>>) -> (i32, i32) {
    %c0_i32 = arith.constant 0 : i32
    %c0_i32_0 = arith.constant 0 : i32
    %c0_i32_1 = arith.constant 0 : i32
    return %c0_i32, %c0_i32_0 : i32, i32
  }
  func.func @transform_14(%arg0: i32, %arg1: memref<2xi32, #tpu.memory_space<smem>>) -> (i32, i32) {
    %c0_i32 = arith.constant 0 : i32
    %c0_i32_0 = arith.constant 0 : i32
    %c0_i32_1 = arith.constant 0 : i32
    return %c0_i32, %c0_i32_0 : i32, i32
  }
  func.func @transform_15(%arg0: i32, %arg1: memref<2xi32, #tpu.memory_space<smem>>) -> (i32, i32) {
    %c0_i32 = arith.constant 0 : i32
    %c0_i32_0 = arith.constant 0 : i32
    %c0_i32_1 = arith.constant 0 : i32
    return %c0_i32, %c0_i32_0 : i32, i32
  }
  func.func @transform_16(%arg0: i32, %arg1: memref<2xi32, #tpu.memory_space<smem>>) -> (i32, i32) {
    %c0_i32 = arith.constant 0 : i32
    %c0_i32_0 = arith.constant 0 : i32
    %c0_i32_1 = arith.constant 0 : i32
    return %c0_i32, %c0_i32_0 : i32, i32
  }
  func.func @transform_17(%arg0: i32, %arg1: memref<2xi32, #tpu.memory_space<smem>>) -> (i32, i32, i32) {
    %c0_i32 = arith.constant 0 : i32
    %c0_i32_0 = arith.constant 0 : i32
    %c0_i32_1 = arith.constant 0 : i32
    return %arg0, %c0_i32, %c0_i32_0 : i32, i32, i32
  }
}

</mosaic_0001>

<llo_original>
// kernel: tpu_custom_call.1
$region0: #{tpu_custom_call.1}
  #allocation0 [shape = 'u32[]', space=smem, size = 0x4, offset = 0x4, fixed_abs, tag = 'smem constant byte address 0x4 - core index']
  #allocation1 [shape = 'u32[72,128]{1,0:T(1,128)}', space=vmem, size = 0x9000, scoped, tag = 'internal scratch']
  #allocation2 [shape = 's32[1]{0}', space=sflag, size = 0x4, scoped, tag = 'scoped memory for tpu_custom_call.1']
  #allocation3 [shape = 'u8[512]{0}', space=smem, size = 0x200, scoped, tag = 'prefetched SMEM operand 0']
  %s0 = inlined_call_operand.vmem [shape: s32[2], index: 0, kind: input, shape index: {}]
  %s1 = inlined_call_operand.vmem [shape: f32[2,8,32], index: 1, kind: input, shape index: {}]
  %s2 = inlined_call_operand.vmem [shape: bf16[2,32,16], index: 2, kind: input, shape index: {}]
  %s3 = inlined_call_operand.vmem [shape: f32[2,1,16], index: 3, kind: input, shape index: {}]
  %s4 = inlined_call_operand.vmem [shape: bf16[2,32,16], index: 4, kind: input, shape index: {}]
  %s5 = inlined_call_operand.vmem [shape: f32[2,1,16], index: 5, kind: input, shape index: {}]
  %s6 = inlined_call_operand.vmem [shape: bf16[2,32,16], index: 6, kind: input, shape index: {}]
  %s7 = inlined_call_operand.vmem [shape: f32[2,1,16], index: 7, kind: input, shape index: {}]
  %s8 = inlined_call_operand.vmem [shape: bf16[2,16,32], index: 8, kind: input, shape index: {}]
  %s9 = inlined_call_operand.vmem [shape: f32[1,32], index: 9, kind: input, shape index: {}]
  %s10 = inlined_call_operand.vmem [shape: f32[1,32], index: 10, kind: input, shape index: {}]
  %s11 = inlined_call_operand.vmem [shape: f32[1,32], index: 11, kind: input, shape index: {}]
  %s12 = inlined_call_operand.vmem [shape: bf16[32,64], index: 12, kind: input, shape index: {}]
  %s13 = inlined_call_operand.vmem [shape: f32[1,64], index: 13, kind: input, shape index: {}]
  %s14 = inlined_call_operand.vmem [shape: bf16[64,32], index: 14, kind: input, shape index: {}]
  %s15 = inlined_call_operand.vmem [shape: f32[1,32], index: 15, kind: input, shape index: {}]
  %s16 = inlined_call_operand.vmem [shape: f32[1,32], index: 16, kind: input, shape index: {}]
  %s17 = inlined_call_operand.vmem [shape: f32[1,32], index: 17, kind: input, shape index: {}]
  %s18 = inlined_call_operand.hbm [shape: f32[2,8,32], index: 18, kind: output, shape index: {}]
  %s19 = sld [smem:[#allocation0]]
  $region101: #{tpu_custom_call.1} parent=0
    _
  %s21 = ssub.s32 1, %s19
  %s22 = scalar_select 0, %s21, %s19
  %s24 = sshll.u32 %s0, 4
  %s25 = int_to_ptr.vmem [resolvable:$true] %s24
  %27 = dma.vmem_to_smem %s25, 16, [#allocation3], [#allocation2]
  %29 = dma.done [#allocation2], 16
  %30 = sfence
  $region1: #{tpu_custom_call.1} parent=0
    #allocation4 [shape = 'u8[8192]{0}', space=vmem, size = 0x2000, scoped, tag = 'output window, operand 0']
    #allocation5 [shape = 's32[2]{0}', space=sflag, size = 0x8, scoped, tag = 'scoped memory for tpu_custom_call.1']
    %31 = vsyncpa [#allocation5], 0
    %s32 = scalar_lea.sflag [#allocation5], 1
    %33 = vsyncpa %s32, 0
    loop: start=0, step=1, limit=4
    $region2: #{tpu_custom_call.1} parent=1 // loop_pre_header
      _
    $region3: #{tpu_custom_call.1} parent=1 // loop_header
      %s35 = sphi 0, %s39
      %p36 = scmp.ge.s32.totalorder %s35, 4
      %s45 = sphi 0, %s47
      %s48 = sphi 0, %s45
      %s49 = sphi 0, %s48
      %s65 = sphi 0, %s49
      %s69 = sphi 0, %s69
      %s71 = sphi 0, %s69
      %s72 = sphi 0, %s71
      %s86 = sphi 0, %s72
      %s90 = sphi 0, %s90
      %s92 = sphi 0, %s90
      %s93 = sphi 0, %s92
      %s107 = sphi 0, %s93
      %s111 = sphi 0, %s111
      %s113 = sphi 0, %s111
      %s114 = sphi 0, %s113
      %s128 = sphi 0, %s114
      %s132 = sphi 0, %s132
      %s134 = sphi 0, %s132
      %s135 = sphi 0, %s134
      %s149 = sphi 0, %s135
      %s153 = sphi 0, %s153
      %s155 = sphi 0, %s153
      %s156 = sphi 0, %s155
      %s170 = sphi 0, %s156
      %s174 = sphi 0, %s174
      %s176 = sphi 0, %s174
      %s177 = sphi 0, %s176
      %s191 = sphi 0, %s177
      %s195 = sphi 0, %s195
      %s197 = sphi 0, %s195
      %s198 = sphi 0, %s197
      %s212 = sphi 0, %s198
      %s216 = sphi 0, %s216
      %s218 = sphi 0, %s216
      %s219 = sphi 0, %s218
      %s233 = sphi 0, %s219
      %s237 = sphi 0, %s237
      %s239 = sphi 0, %s237
      %s240 = sphi 0, %s239
      %s254 = sphi 0, %s240
      %s258 = sphi 0, %s258
      %s260 = sphi 0, %s258
      %s261 = sphi 0, %s260
      %s275 = sphi 0, %s261
      %s279 = sphi 0, %s279
      %s281 = sphi 0, %s279
      %s282 = sphi 0, %s281
      %s296 = sphi 0, %s282
      %s300 = sphi 0, %s300
      %s302 = sphi 0, %s300
      %s303 = sphi 0, %s302
      %s317 = sphi 0, %s303
      %s321 = sphi 0, %s321
      %s323 = sphi 0, %s321
      %s324 = sphi 0, %s323
      %s338 = sphi 0, %s324
      %s342 = sphi 0, %s342
      %s344 = sphi 0, %s342
      %s345 = sphi 0, %s344
      %s359 = sphi 0, %s345
      %s363 = sphi 0, %s363
      %s365 = sphi 0, %s363
      %s366 = sphi 0, %s365
      %s380 = sphi 0, %s366
      %s384 = sphi 0, %s384
      %s386 = sphi 0, %s384
      %s387 = sphi 0, %s386
      %s401 = sphi 0, %s387
      %s407 = sphi 0, %s409
      %s410 = sphi 0, %s407
      %s411 = sphi 0, %s410
      %s427 = sphi 0, %s411
    $region4: #{tpu_custom_call.1} parent=1 // loop_header_branch
      %38 = sbr.rel (%p36) target = $region8
    $region5: #{tpu_custom_call.1} parent=1 // loop_body
      %s40 = ssub.s32 %s35, 1
      %s41 = ssub.s32 %s35, 2
      %s42 = sadd.s32 %s35, 1
      %s43 = ssub.s32 %s35, %s42
      %p44 = scmp.eq.s32.totalorder %s43, 0
      %s46 = sadd.s32 %s45, 1
      %s47 = scalar_select %p44, %s45, %s46
      %p50 = pneg %p44
      %p51 = scmp.eq.s32.totalorder %s35, 1
      %p52 = por %p50, %p51
      %p53 = scmp.ne.s32.totalorder %s45, %s48
      %p54 = scmp.eq.s32.totalorder %s35, 0
      %p55 = por %p53, %p54
      %p56 = scmp.ne.s32.totalorder %s45, %s48
      %p57 = scmp.eq.s32.totalorder %s40, 1
      %p58 = por %p56, %p57
      %p59 = scmp.ne.s32.totalorder %s48, %s49
      %p60 = scmp.eq.s32.totalorder %s40, 0
      %p61 = por %p59, %p60
      %p62 = scmp.ne.s32.totalorder %s48, %s49
      %p63 = scmp.eq.s32.totalorder %s41, 1
      %p64 = por %p62, %p63
      %p66 = scmp.ne.s32.totalorder %s49, %s65
      %p67 = scmp.eq.s32.totalorder %s41, 0
      %p68 = por %p66, %p67
      %s70 = sadd.s32 %s69, 1
      %p73 = scmp.eq.s32.totalorder %s35, 1
      %p74 = scmp.ne.s32.totalorder %s69, %s71
      %p75 = scmp.eq.s32.totalorder %s35, 0
      %p76 = por %p74, %p75
      %p77 = scmp.ne.s32.totalorder %s69, %s71
      %p78 = scmp.eq.s32.totalorder %s40, 1
      %p79 = por %p77, %p78
      %p80 = scmp.ne.s32.totalorder %s71, %s72
      %p81 = scmp.eq.s32.totalorder %s40, 0
      %p82 = por %p80, %p81
      %p83 = scmp.ne.s32.totalorder %s71, %s72
      %p84 = scmp.eq.s32.totalorder %s41, 1
      %p85 = por %p83, %p84
      %p87 = scmp.ne.s32.totalorder %s72, %s86
      %p88 = scmp.eq.s32.totalorder %s41, 0
      %p89 = por %p87, %p88
      %s91 = sadd.s32 %s90, 1
      %p94 = scmp.eq.s32.totalorder %s35, 1
      %p95 = scmp.ne.s32.totalorder %s90, %s92
      %p96 = scmp.eq.s32.totalorder %s35, 0
      %p97 = por %p95, %p96
      %p98 = scmp.ne.s32.totalorder %s90, %s92
      %p99 = scmp.eq.s32.totalorder %s40, 1
      %p100 = por %p98, %p99
      %p101 = scmp.ne.s32.totalorder %s92, %s93
      %p102 = scmp.eq.s32.totalorder %s40, 0
      %p103 = por %p101, %p102
      %p104 = scmp.ne.s32.totalorder %s92, %s93
      %p105 = scmp.eq.s32.totalorder %s41, 1
      %p106 = por %p104, %p105
      %p108 = scmp.ne.s32.totalorder %s93, %s107
      %p109 = scmp.eq.s32.totalorder %s41, 0
      %p110 = por %p108, %p109
      %s112 = sadd.s32 %s111, 1
      %p115 = scmp.eq.s32.totalorder %s35, 1
      %p116 = scmp.ne.s32.totalorder %s111, %s113
      %p117 = scmp.eq.s32.totalorder %s35, 0
      %p118 = por %p116, %p117
      %p119 = scmp.ne.s32.totalorder %s111, %s113
      %p120 = scmp.eq.s32.totalorder %s40, 1
      %p121 = por %p119, %p120
      %p122 = scmp.ne.s32.totalorder %s113, %s114
      %p123 = scmp.eq.s32.totalorder %s40, 0
      %p124 = por %p122, %p123
      %p125 = scmp.ne.s32.totalorder %s113, %s114
      %p126 = scmp.eq.s32.totalorder %s41, 1
      %p127 = por %p125, %p126
      %p129 = scmp.ne.s32.totalorder %s114, %s128
      %p130 = scmp.eq.s32.totalorder %s41, 0
      %p131 = por %p129, %p130
      %s133 = sadd.s32 %s132, 1
      %p136 = scmp.eq.s32.totalorder %s35, 1
      %p137 = scmp.ne.s32.totalorder %s132, %s134
      %p138 = scmp.eq.s32.totalorder %s35, 0
      %p139 = por %p137, %p138
      %p140 = scmp.ne.s32.totalorder %s132, %s134
      %p141 = scmp.eq.s32.totalorder %s40, 1
      %p142 = por %p140, %p141
      %p143 = scmp.ne.s32.totalorder %s134, %s135
      %p144 = scmp.eq.s32.totalorder %s40, 0
      %p145 = por %p143, %p144
      %p146 = scmp.ne.s32.totalorder %s134, %s135
      %p147 = scmp.eq.s32.totalorder %s41, 1
      %p148 = por %p146, %p147
      %p150 = scmp.ne.s32.totalorder %s135, %s149
      %p151 = scmp.eq.s32.totalorder %s41, 0
      %p152 = por %p150, %p151
      %s154 = sadd.s32 %s153, 1
      %p157 = scmp.eq.s32.totalorder %s35, 1
      %p158 = scmp.ne.s32.totalorder %s153, %s155
      %p159 = scmp.eq.s32.totalorder %s35, 0
      %p160 = por %p158, %p159
      %p161 = scmp.ne.s32.totalorder %s153, %s155
      %p162 = scmp.eq.s32.totalorder %s40, 1
      %p163 = por %p161, %p162
      %p164 = scmp.ne.s32.totalorder %s155, %s156
      %p165 = scmp.eq.s32.totalorder %s40, 0
      %p166 = por %p164, %p165
      %p167 = scmp.ne.s32.totalorder %s155, %s156
      %p168 = scmp.eq.s32.totalorder %s41, 1
      %p169 = por %p167, %p168
      %p171 = scmp.ne.s32.totalorder %s156, %s170
      %p172 = scmp.eq.s32.totalorder %s41, 0
      %p173 = por %p171, %p172
      %s175 = sadd.s32 %s174, 1
      %p178 = scmp.eq.s32.totalorder %s35, 1
      %p179 = scmp.ne.s32.totalorder %s174, %s176
      %p180 = scmp.eq.s32.totalorder %s35, 0
      %p181 = por %p179, %p180
      %p182 = scmp.ne.s32.totalorder %s174, %s176
      %p183 = scmp.eq.s32.totalorder %s40, 1
      %p184 = por %p182, %p183
      %p185 = scmp.ne.s32.totalorder %s176, %s177
      %p186 = scmp.eq.s32.totalorder %s40, 0
      %p187 = por %p185, %p186
      %p188 = scmp.ne.s32.totalorder %s176, %s177
      %p189 = scmp.eq.s32.totalorder %s41, 1
      %p190 = por %p188, %p189
      %p192 = scmp.ne.s32.totalorder %s177, %s191
      %p193 = scmp.eq.s32.totalorder %s41, 0
      %p194 = por %p192, %p193
      %s196 = sadd.s32 %s195, 1
      %p199 = scmp.eq.s32.totalorder %s35, 1
      %p200 = scmp.ne.s32.totalorder %s195, %s197
      %p201 = scmp.eq.s32.totalorder %s35, 0
      %p202 = por %p200, %p201
      %p203 = scmp.ne.s32.totalorder %s195, %s197
      %p204 = scmp.eq.s32.totalorder %s40, 1
      %p205 = por %p203, %p204
      %p206 = scmp.ne.s32.totalorder %s197, %s198
      %p207 = scmp.eq.s32.totalorder %s40, 0
      %p208 = por %p206, %p207
      %p209 = scmp.ne.s32.totalorder %s197, %s198
      %p210 = scmp.eq.s32.totalorder %s41, 1
      %p211 = por %p209, %p210
      %p213 = scmp.ne.s32.totalorder %s198, %s212
      %p214 = scmp.eq.s32.totalorder %s41, 0
      %p215 = por %p213, %p214
      %s217 = sadd.s32 %s216, 1
      %p220 = scmp.eq.s32.totalorder %s35, 1
      %p221 = scmp.ne.s32.totalorder %s216, %s218
      %p222 = scmp.eq.s32.totalorder %s35, 0
      %p223 = por %p221, %p222
      %p224 = scmp.ne.s32.totalorder %s216, %s218
      %p225 = scmp.eq.s32.totalorder %s40, 1
      %p226 = por %p224, %p225
      %p227 = scmp.ne.s32.totalorder %s218, %s219
      %p228 = scmp.eq.s32.totalorder %s40, 0
      %p229 = por %p227, %p228
      %p230 = scmp.ne.s32.totalorder %s218, %s219
      %p231 = scmp.eq.s32.totalorder %s41, 1
      %p232 = por %p230, %p231
      %p234 = scmp.ne.s32.totalorder %s219, %s233
      %p235 = scmp.eq.s32.totalorder %s41, 0
      %p236 = por %p234, %p235
      %s238 = sadd.s32 %s237, 1
      %p241 = scmp.eq.s32.totalorder %s35, 1
      %p242 = scmp.ne.s32.totalorder %s237, %s239
      %p243 = scmp.eq.s32.totalorder %s35, 0
      %p244 = por %p242, %p243
      %p245 = scmp.ne.s32.totalorder %s237, %s239
      %p246 = scmp.eq.s32.totalorder %s40, 1
      %p247 = por %p245, %p246
      %p248 = scmp.ne.s32.totalorder %s239, %s240
      %p249 = scmp.eq.s32.totalorder %s40, 0
      %p250 = por %p248, %p249
      %p251 = scmp.ne.s32.totalorder %s239, %s240
      %p252 = scmp.eq.s32.totalorder %s41, 1
      %p253 = por %p251, %p252
      %p255 = scmp.ne.s32.totalorder %s240, %s254
      %p256 = scmp.eq.s32.totalorder %s41, 0
      %p257 = por %p255, %p256
      %s259 = sadd.s32 %s258, 1
      %p262 = scmp.eq.s32.totalorder %s35, 1
      %p263 = scmp.ne.s32.totalorder %s258, %s260
      %p264 = scmp.eq.s32.totalorder %s35, 0
      %p265 = por %p263, %p264
      %p266 = scmp.ne.s32.totalorder %s258, %s260
      %p267 = scmp.eq.s32.totalorder %s40, 1
      %p268 = por %p266, %p267
      %p269 = scmp.ne.s32.totalorder %s260, %s261
      %p270 = scmp.eq.s32.totalorder %s40, 0
      %p271 = por %p269, %p270
      %p272 = scmp.ne.s32.totalorder %s260, %s261
      %p273 = scmp.eq.s32.totalorder %s41, 1
      %p274 = por %p272, %p273
      %p276 = scmp.ne.s32.totalorder %s261, %s275
      %p277 = scmp.eq.s32.totalorder %s41, 0
      %p278 = por %p276, %p277
      %s280 = sadd.s32 %s279, 1
      %p283 = scmp.eq.s32.totalorder %s35, 1
      %p284 = scmp.ne.s32.totalorder %s279, %s281
      %p285 = scmp.eq.s32.totalorder %s35, 0
      %p286 = por %p284, %p285
      %p287 = scmp.ne.s32.totalorder %s279, %s281
      %p288 = scmp.eq.s32.totalorder %s40, 1
      %p289 = por %p287, %p288
      %p290 = scmp.ne.s32.totalorder %s281, %s282
      %p291 = scmp.eq.s32.totalorder %s40, 0
      %p292 = por %p290, %p291
      %p293 = scmp.ne.s32.totalorder %s281, %s282
      %p294 = scmp.eq.s32.totalorder %s41, 1
      %p295 = por %p293, %p294
      %p297 = scmp.ne.s32.totalorder %s282, %s296
      %p298 = scmp.eq.s32.totalorder %s41, 0
      %p299 = por %p297, %p298
      %s301 = sadd.s32 %s300, 1
      %p304 = scmp.eq.s32.totalorder %s35, 1
      %p305 = scmp.ne.s32.totalorder %s300, %s302
      %p306 = scmp.eq.s32.totalorder %s35, 0
      %p307 = por %p305, %p306
      %p308 = scmp.ne.s32.totalorder %s300, %s302
      %p309 = scmp.eq.s32.totalorder %s40, 1
      %p310 = por %p308, %p309
      %p311 = scmp.ne.s32.totalorder %s302, %s303
      %p312 = scmp.eq.s32.totalorder %s40, 0
      %p313 = por %p311, %p312
      %p314 = scmp.ne.s32.totalorder %s302, %s303
      %p315 = scmp.eq.s32.totalorder %s41, 1
      %p316 = por %p314, %p315
      %p318 = scmp.ne.s32.totalorder %s303, %s317
      %p319 = scmp.eq.s32.totalorder %s41, 0
      %p320 = por %p318, %p319
      %s322 = sadd.s32 %s321, 1
      %p325 = scmp.eq.s32.totalorder %s35, 1
      %p326 = scmp.ne.s32.totalorder %s321, %s323
      %p327 = scmp.eq.s32.totalorder %s35, 0
      %p328 = por %p326, %p327
      %p329 = scmp.ne.s32.totalorder %s321, %s323
      %p330 = scmp.eq.s32.totalorder %s40, 1
      %p331 = por %p329, %p330
      %p332 = scmp.ne.s32.totalorder %s323, %s324
      %p333 = scmp.eq.s32.totalorder %s40, 0
      %p334 = por %p332, %p333
      %p335 = scmp.ne.s32.totalorder %s323, %s324
      %p336 = scmp.eq.s32.totalorder %s41, 1
      %p337 = por %p335, %p336
      %p339 = scmp.ne.s32.totalorder %s324, %s338
      %p340 = scmp.eq.s32.totalorder %s41, 0
      %p341 = por %p339, %p340
      %s343 = sadd.s32 %s342, 1
      %p346 = scmp.eq.s32.totalorder %s35, 1
      %p347 = scmp.ne.s32.totalorder %s342, %s344
      %p348 = scmp.eq.s32.totalorder %s35, 0
      %p349 = por %p347, %p348
      %p350 = scmp.ne.s32.totalorder %s342, %s344
      %p351 = scmp.eq.s32.totalorder %s40, 1
      %p352 = por %p350, %p351
      %p353 = scmp.ne.s32.totalorder %s344, %s345
      %p354 = scmp.eq.s32.totalorder %s40, 0
      %p355 = por %p353, %p354
      %p356 = scmp.ne.s32.totalorder %s344, %s345
      %p357 = scmp.eq.s32.totalorder %s41, 1
      %p358 = por %p356, %p357
      %p360 = scmp.ne.s32.totalorder %s345, %s359
      %p361 = scmp.eq.s32.totalorder %s41, 0
      %p362 = por %p360, %p361
      %s364 = sadd.s32 %s363, 1
      %p367 = scmp.eq.s32.totalorder %s35, 1
      %p368 = scmp.ne.s32.totalorder %s363, %s365
      %p369 = scmp.eq.s32.totalorder %s35, 0
      %p370 = por %p368, %p369
      %p371 = scmp.ne.s32.totalorder %s363, %s365
      %p372 = scmp.eq.s32.totalorder %s40, 1
      %p373 = por %p371, %p372
      %p374 = scmp.ne.s32.totalorder %s365, %s366
      %p375 = scmp.eq.s32.totalorder %s40, 0
      %p376 = por %p374, %p375
      %p377 = scmp.ne.s32.totalorder %s365, %s366
      %p378 = scmp.eq.s32.totalorder %s41, 1
      %p379 = por %p377, %p378
      %p381 = scmp.ne.s32.totalorder %s366, %s380
      %p382 = scmp.eq.s32.totalorder %s41, 0
      %p383 = por %p381, %p382
      %s385 = sadd.s32 %s384, 1
      %p388 = scmp.eq.s32.totalorder %s35, 1
      %p389 = scmp.ne.s32.totalorder %s384, %s386
      %p390 = scmp.eq.s32.totalorder %s35, 0
      %p391 = por %p389, %p390
      %p392 = scmp.ne.s32.totalorder %s384, %s386
      %p393 = scmp.eq.s32.totalorder %s40, 1
      %p394 = por %p392, %p393
      %p395 = scmp.ne.s32.totalorder %s386, %s387
      %p396 = scmp.eq.s32.totalorder %s40, 0
      %p397 = por %p395, %p396
      %p398 = scmp.ne.s32.totalorder %s386, %s387
      %p399 = scmp.eq.s32.totalorder %s41, 1
      %p400 = por %p398, %p399
      %p402 = scmp.ne.s32.totalorder %s387, %s401
      %p403 = scmp.eq.s32.totalorder %s41, 0
      %p404 = por %p402, %p403
      %s405 = ssub.s32 %s35, %s42
      %p406 = scmp.eq.s32.totalorder %s405, 0
      %s408 = sadd.s32 %s407, 1
      %s409 = scalar_select %p406, %s407, %s408
      %p412 = pneg %p406
      %p413 = scmp.eq.s32.totalorder %s35, 1
      %p414 = por %p412, %p413
      %p415 = scmp.ne.s32.totalorder %s407, %s410
      %p416 = scmp.eq.s32.totalorder %s35, 0
      %p417 = por %p415, %p416
      %p418 = scmp.ne.s32.totalorder %s407, %s410
      %p419 = scmp.eq.s32.totalorder %s40, 1
      %p420 = por %p418, %p419
      %p421 = scmp.ne.s32.totalorder %s410, %s411
      %p422 = scmp.eq.s32.totalorder %s40, 0
      %p423 = por %p421, %p422
      %p424 = scmp.ne.s32.totalorder %s410, %s411
      %p425 = scmp.eq.s32.totalorder %s41, 1
      %p426 = por %p424, %p425
      %p428 = scmp.ne.s32.totalorder %s411, %s427
      %p429 = scmp.eq.s32.totalorder %s41, 0
      %p430 = por %p428, %p429
      %p431 = scmp.le.s32.totalorder 1, %s35
      %p432 = scmp.lt.s32.totalorder %s35, 3
      %p433 = pnand %p431, %p432
      %p434 = pneg %p433
      // Predicated region
      $region9: #{tpu_custom_call.1} parent=5 // pred_check
        _
      $region10: #{tpu_custom_call.1} parent=5 // pred_check_branch
        %436 = sbr.rel (%p433) target = $region12
      $region11: #{tpu_custom_call.1} parent=5 // pred_region
        %s437 = ssub.s32 %s35, 1
        // Predicated region
        $region13: #{tpu_custom_call.1} parent=11 // pred_check
          %p438 = pneg %p82
        $region14: #{tpu_custom_call.1} parent=11 // pred_check_branch
          %440 = sbr.rel (%p438) target = $region16
        $region15: #{tpu_custom_call.1} parent=11 // pred_region
          _
        $region16: #{tpu_custom_call.1} parent=11 // pred_fallthru
          _
        // Predicated region
        $region17: #{tpu_custom_call.1} parent=11 // pred_check
          %p441 = pneg %p103
        $region18: #{tpu_custom_call.1} parent=11 // pred_check_branch
          %443 = sbr.rel (%p441) target = $region20
        $region19: #{tpu_custom_call.1} parent=11 // pred_region
          _
        $region20: #{tpu_custom_call.1} parent=11 // pred_fallthru
          _
        // Predicated region
        $region21: #{tpu_custom_call.1} parent=11 // pred_check
          %p444 = pneg %p124
        $region22: #{tpu_custom_call.1} parent=11 // pred_check_branch
          %446 = sbr.rel (%p444) target = $region24
        $region23: #{tpu_custom_call.1} parent=11 // pred_region
          _
        $region24: #{tpu_custom_call.1} parent=11 // pred_fallthru
          _
        // Predicated region
        $region25: #{tpu_custom_call.1} parent=11 // pred_check
          %p447 = pneg %p145
        $region26: #{tpu_custom_call.1} parent=11 // pred_check_branch
          %449 = sbr.rel (%p447) target = $region28
        $region27: #{tpu_custom_call.1} parent=11 // pred_region
          _
        $region28: #{tpu_custom_call.1} parent=11 // pred_fallthru
          _
        // Predicated region
        $region29: #{tpu_custom_call.1} parent=11 // pred_check
          %p450 = pneg %p166
        $region30: #{tpu_custom_call.1} parent=11 // pred_check_branch
          %452 = sbr.rel (%p450) target = $region32
        $region31: #{tpu_custom_call.1} parent=11 // pred_region
          _
        $region32: #{tpu_custom_call.1} parent=11 // pred_fallthru
          _
        // Predicated region
        $region33: #{tpu_custom_call.1} parent=11 // pred_check
          %p453 = pneg %p187
        $region34: #{tpu_custom_call.1} parent=11 // pred_check_branch
          %455 = sbr.rel (%p453) target = $region36
        $region35: #{tpu_custom_call.1} parent=11 // pred_region
          _
        $region36: #{tpu_custom_call.1} parent=11 // pred_fallthru
          _
        // Predicated region
        $region37: #{tpu_custom_call.1} parent=11 // pred_check
          %p456 = pneg %p208
        $region38: #{tpu_custom_call.1} parent=11 // pred_check_branch
          %458 = sbr.rel (%p456) target = $region40
        $region39: #{tpu_custom_call.1} parent=11 // pred_region
          _
        $region40: #{tpu_custom_call.1} parent=11 // pred_fallthru
          _
        // Predicated region
        $region41: #{tpu_custom_call.1} parent=11 // pred_check
          %p459 = pneg %p229
        $region42: #{tpu_custom_call.1} parent=11 // pred_check_branch
          %461 = sbr.rel (%p459) target = $region44
        $region43: #{tpu_custom_call.1} parent=11 // pred_region
          _
        $region44: #{tpu_custom_call.1} parent=11 // pred_fallthru
          _
        // Predicated region
        $region45: #{tpu_custom_call.1} parent=11 // pred_check
          %p462 = pneg %p250
        $region46: #{tpu_custom_call.1} parent=11 // pred_check_branch
          %464 = sbr.rel (%p462) target = $region48
        $region47: #{tpu_custom_call.1} parent=11 // pred_region
          _
        $region48: #{tpu_custom_call.1} parent=11 // pred_fallthru
          _
        // Predicated region
        $region49: #{tpu_custom_call.1} parent=11 // pred_check
          %p465 = pneg %p271
        $region50: #{tpu_custom_call.1} parent=11 // pred_check_branch
          %467 = sbr.rel (%p465) target = $region52
        $region51: #{tpu_custom_call.1} parent=11 // pred_region
          _
        $region52: #{tpu_custom_call.1} parent=11 // pred_fallthru
          _
        // Predicated region
        $region53: #{tpu_custom_call.1} parent=11 // pred_check
          %p468 = pneg %p292
        $region54: #{tpu_custom_call.1} parent=11 // pred_check_branch
          %470 = sbr.rel (%p468) target = $region56
        $region55: #{tpu_custom_call.1} parent=11 // pred_region
          _
        $region56: #{tpu_custom_call.1} parent=11 // pred_fallthru
          _
        // Predicated region
        $region57: #{tpu_custom_call.1} parent=11 // pred_check
          %p471 = pneg %p313
        $region58: #{tpu_custom_call.1} parent=11 // pred_check_branch
          %473 = sbr.rel (%p471) target = $region60
        $region59: #{tpu_custom_call.1} parent=11 // pred_region
          _
        $region60: #{tpu_custom_call.1} parent=11 // pred_fallthru
          _
        // Predicated region
        $region61: #{tpu_custom_call.1} parent=11 // pred_check
          %p474 = pneg %p334
        $region62: #{tpu_custom_call.1} parent=11 // pred_check_branch
          %476 = sbr.rel (%p474) target = $region64
        $region63: #{tpu_custom_call.1} parent=11 // pred_region
          _
        $region64: #{tpu_custom_call.1} parent=11 // pred_fallthru
          _
        // Predicated region
        $region65: #{tpu_custom_call.1} parent=11 // pred_check
          %p477 = pneg %p355
        $region66: #{tpu_custom_call.1} parent=11 // pred_check_branch
          %479 = sbr.rel (%p477) target = $region68
        $region67: #{tpu_custom_call.1} parent=11 // pred_region
          _
        $region68: #{tpu_custom_call.1} parent=11 // pred_fallthru
          _
        // Predicated region
        $region69: #{tpu_custom_call.1} parent=11 // pred_check
          %p480 = pneg %p376
        $region70: #{tpu_custom_call.1} parent=11 // pred_check_branch
          %482 = sbr.rel (%p480) target = $region72
        $region71: #{tpu_custom_call.1} parent=11 // pred_region
          _
        $region72: #{tpu_custom_call.1} parent=11 // pred_fallthru
          _
        // Predicated region
        $region73: #{tpu_custom_call.1} parent=11 // pred_check
          %p483 = pneg %p397
        $region74: #{tpu_custom_call.1} parent=11 // pred_check_branch
          %485 = sbr.rel (%p483) target = $region76
        $region75: #{tpu_custom_call.1} parent=11 // pred_region
          _
        $region76: #{tpu_custom_call.1} parent=11 // pred_fallthru
          _
      $region12: #{tpu_custom_call.1} parent=5 // pred_fallthru
        _
      %p486 = scmp.lt.s32.totalorder %s35, 2
      // Predicated region
      $region77: #{tpu_custom_call.1} parent=5 // pred_check
        %p487 = pneg %p486
      $region78: #{tpu_custom_call.1} parent=5 // pred_check_branch
        %489 = sbr.rel (%p487) target = $region80
      $region79: #{tpu_custom_call.1} parent=5 // pred_region
        // Predicated region
        $region81: #{tpu_custom_call.1} parent=79 // pred_check
          %p490 = pneg %p55
        $region82: #{tpu_custom_call.1} parent=79 // pred_check_branch
          %492 = sbr.rel (%p490) target = $region84
        $region83: #{tpu_custom_call.1} parent=79 // pred_region
          %p493 = scmp.lt.s32.totalorder %s35, 1
          %s494 = scalar_select %p493, %s35, 1
          %s495 = smul.addr %s494, 8
          %s496 = scalar_lea.vmem %s1, %s495
        $region84: #{tpu_custom_call.1} parent=79 // pred_fallthru
          _
      $region80: #{tpu_custom_call.1} parent=5 // pred_fallthru
        _
      %p497 = scmp.le.s32.totalorder 1, %s35
      %p498 = scmp.lt.s32.totalorder %s35, 3
      %p499 = pnand %p497, %p498
      %p500 = pneg %p499
      // Predicated region
      $region85: #{tpu_custom_call.1} parent=5 // pred_check
        _
      $region86: #{tpu_custom_call.1} parent=5 // pred_check_branch
        %502 = sbr.rel (%p499) target = $region88
      $region87: #{tpu_custom_call.1} parent=5 // pred_region
        %s503 = ssub.s32 %s35, 1
        %p504 = scmp.lt.s32.totalorder %s40, 1
        %s505 = scalar_select %p504, %s40, 1
        %s506 = smul.addr %s505, 8
        %s507 = scalar_lea.vmem %s1, %s506
        %p508 = pneg %p61
        %p509 = pneg %p58
        %p510 = pneg %p82
        %p511 = pneg %p79
        %p512 = pneg %p103
        %p513 = pneg %p100
        %p514 = pneg %p124
        %p515 = pneg %p121
        %p516 = pneg %p145
        %p517 = pneg %p142
        %p518 = pneg %p166
        %p519 = pneg %p163
        %p520 = pneg %p187
        %p521 = pneg %p184
        %p522 = pneg %p208
        %p523 = pneg %p205
        %p524 = pneg %p229
        %p525 = pneg %p226
        %p526 = pneg %p250
        %p527 = pneg %p247
        %p528 = pneg %p271
        %p529 = pneg %p268
        %p530 = pneg %p292
        %p531 = pneg %p289
        %p532 = pneg %p313
        %p533 = pneg %p310
        %p534 = pneg %p334
        %p535 = pneg %p331
        %p536 = pneg %p355
        %p537 = pneg %p352
        %p538 = pneg %p376
        %p539 = pneg %p373
        %p540 = pneg %p397
        %p541 = pneg %p394
        %p542 = pneg %p423
        %p543 = pneg %p420
        %s544 = sand.u32 %s410, 1
        %s545 = scalar_lea.sflag [#allocation5], %s544
        %s546 = sand.u32 %s410, 1
        %s547 = smul.addr %s546, 8
        %s548 = scalar_lea.vmem [#allocation4], %s547
        %p549 = scmp.lt.s32.totalorder %s40, 1
        %s550 = scalar_select %p549, %s40, 1
        %s551 = smul.addr %s550, 8
        %s552 = scalar_lea.vmem %s1, %s551
        %s554 = sld [smem:[#allocation3 + %s40]]
        %v555 = vld [vmem:[%s552] sm:$0xff]
        %v556 = vpack.c.bf16 %v555, %v555
        %v557 = vlaneseq
        %v558 = vand.u32 %v557, 127
        %v559 = vstv %s554
        %vm560 = vcmp.lt.s32.totalorder %v558, %v559
        %v561 = vld [vmem:[%s2] sm:$0xf]
        %v562 = vld [vmem:[%s2 + $0x4] sm:$0xf]
        %v563 = vld [vmem:[%s2 + $0x8] sm:$0xf]
        %v564 = vld [vmem:[%s2 + $0xc] sm:$0xf]
        %v565 = vld [vmem:[%s3] sm:$0x1]
        %v567 = vperm.slane %v565, 0
        %v573 = vunpack.c.l.b16 %v561
        %v574 = vunpack.c.l.b16 %v562
        %v575 = vunpack.c.l.b16 %v563
        %v576 = vunpack.c.l.b16 %v564
        %v577 = vpack.c.b16 %v574, %v573
        %v578 = vpack.c.b16 %v576, %v575
        %vm581 = vcmask 261120
        %v583 = vsel %vm581, %v556, 0
        %585 = vmatpush.bf16.msra.mxu0 0
        %586 = vmatpush.bf16.msra.mxu0 0
        %587 = vmatpush.bf16.msra.mxu0 0
        %588 = vmatpush.bf16.msra.mxu0 0
        %589 = vmatpush.bf16.msra.mxu0 0
        %590 = vmatpush.bf16.msra.mxu0 0
        %591 = vmatpush.bf16.msra.mxu0 %v578
        %592 = vmatpush.bf16.msra.mxu0 %v577
        %593 = vmatmul.bf16.gmra.mxu0 %v583
        %v594 = vpop.f32.mrf.mxu0
        %v595 = vadd.f32 %v567, %v594
        %v596 = vpop.f32.mrf.mxu0
        %597 = vdwg.mxu0
        %v598 = vld [vmem:[%s4] sm:$0xf]
        %v599 = vld [vmem:[%s4 + $0x4] sm:$0xf]
        %v600 = vld [vmem:[%s4 + $0x8] sm:$0xf]
        %v601 = vld [vmem:[%s4 + $0xc] sm:$0xf]
        %v602 = vld [vmem:[%s5] sm:$0x1]
        %v604 = vperm.slane %v602, 0
        %v610 = vunpack.c.l.b16 %v598
        %v611 = vunpack.c.l.b16 %v599
        %v612 = vunpack.c.l.b16 %v600
        %v613 = vunpack.c.l.b16 %v601
        %v614 = vpack.c.b16 %v611, %v610
        %v615 = vpack.c.b16 %v613, %v612
        %618 = vmatpush.bf16.msra.mxu0 0
        %619 = vmatpush.bf16.msra.mxu0 0
        %620 = vmatpush.bf16.msra.mxu0 0
        %621 = vmatpush.bf16.msra.mxu0 0
        %622 = vmatpush.bf16.msra.mxu0 0
        %623 = vmatpush.bf16.msra.mxu0 0
        %624 = vmatpush.bf16.msra.mxu0 %v615
        %625 = vmatpush.bf16.msra.mxu0 %v614
        %626 = vmatmul.bf16.gmra.mxu0 %v583
        %v627 = vpop.f32.mrf.mxu0
        %v628 = vadd.f32 %v604, %v627
        %v629 = vpop.f32.mrf.mxu0
        %630 = vdwg.mxu0
        %v631 = vld [vmem:[%s6] sm:$0xf]
        %v632 = vld [vmem:[%s6 + $0x4] sm:$0xf]
        %v633 = vld [vmem:[%s6 + $0x8] sm:$0xf]
        %v634 = vld [vmem:[%s6 + $0xc] sm:$0xf]
        %v635 = vld [vmem:[%s7] sm:$0x1]
        %v637 = vperm.slane %v635, 0
        %v643 = vunpack.c.l.b16 %v631
        %v644 = vunpack.c.l.b16 %v632
        %v645 = vunpack.c.l.b16 %v633
        %v646 = vunpack.c.l.b16 %v634
        %v647 = vpack.c.b16 %v644, %v643
        %v648 = vpack.c.b16 %v646, %v645
        %651 = vmatpush.bf16.msra.mxu0 0
        %652 = vmatpush.bf16.msra.mxu0 0
        %653 = vmatpush.bf16.msra.mxu0 0
        %654 = vmatpush.bf16.msra.mxu0 0
        %655 = vmatpush.bf16.msra.mxu0 0
        %656 = vmatpush.bf16.msra.mxu0 0
        %657 = vmatpush.bf16.msra.mxu0 %v648
        %658 = vmatpush.bf16.msra.mxu0 %v647
        %659 = vmatmul.bf16.gmra.mxu0 %v583
        %v660 = vpop.f32.mrf.mxu0
        %v661 = vadd.f32 %v637, %v660
        %v662 = vpop.f32.mrf.mxu0
        %663 = vdwg.mxu0
        %v664 = vpack.c.bf16 %v595, %v595
        %v665 = vpack.c.bf16 %v628, %v628
        %vm666 = vcmask 130048
        %v668 = vsel %vm666, %v664, 0
        %v671 = vsel %vm666, %v665, 0
        %673 = vmatpush.bf16.xpose.msra.mxu0 0
        %674 = vmatpush.bf16.xpose.msra.mxu0 0
        %675 = vmatpush.bf16.xpose.msra.mxu0 0
        %676 = vmatpush.bf16.xpose.msra.mxu0 0
        %677 = vmatpush.bf16.xpose.msra.mxu0 0
        %678 = vmatpush.bf16.xpose.msra.mxu0 0
        %679 = vmatpush.bf16.xpose.msra.mxu0 0
        %680 = vmatpush.bf16.xpose.msra.mxu0 %v671
        %681 = vmatmul.bf16.gmra.mxu0 %v668
        %v682 = vpop.f32.mrf.mxu0
        %v683 = vadd.f32 0.0, %v682
        %v684 = vpop.f32.mrf.mxu0
        %685 = vdwg.mxu0
        %v686 = vmul.f32 %v683, 0.25
        %v687 = vsel %vm560, 1, 0
        %vm688 = vcmp.eq.s32.totalorder %v687, 1
        %v689 = vsel %vm688, %v686, -1000000.0
        %vm690 = vcmask 64512
        %v691 = vsel %vm690, %v689, -inf
        %692 = vmax.xlane.f32.xlu0 %v691
        %v693 = vpop.xlane.xlu0 %692
        %v694 = vsub.f32 %v689, %v693
        %v695 = vmul.f32 %v694, 1.442695
        %v696 = vpow.pop %v695
        %v697 = vsel %vm690, %v696, 0.0
        %698 = vadd.xlane.f32.xlu0 %v697
        %v699 = vpop.xlane.xlu0 %698
        %v700 = vrcp.pop %v699
        %v701 = vmul.f32 %v696, %v700
        %v702 = vpack.c.bf16 %v701, %v701
        %v703 = vpack.c.bf16 %v661, %v661
        %v705 = vsel %vm690, %v702, 0
        %vm707 = vcmask 1043456
        %v709 = vsel %vm707, %v703, 0
        %711 = vmatpush.bf16.msra.mxu0 0
        %712 = vmatpush.bf16.msra.mxu0 0
        %713 = vmatpush.bf16.msra.mxu0 0
        %714 = vmatpush.bf16.msra.mxu0 0
        %715 = vmatpush.bf16.msra.mxu0 0
        %716 = vmatpush.bf16.msra.mxu0 0
        %717 = vmatpush.bf16.msra.mxu0 0
        %718 = vmatpush.bf16.msra.mxu0 %v709
        %719 = vmatmul.bf16.gmra.mxu0 %v705
        %v720 = vpop.f32.mrf.mxu0
        %v721 = vadd.f32 0.0, %v720
        %v722 = vpop.f32.mrf.mxu0
        %723 = vdwg.mxu0
        %v724 = vpack.c.bf16 %v721, %v721
        %v725 = vld [vmem:[%s8] sm:$0xf]
        %v726 = vld [vmem:[%s8 + $0x4] sm:$0xf]
        %s727 = scalar_lea.vmem %s2, 16
        %v728 = vld [vmem:[%s727] sm:$0xf]
        %v729 = vld [vmem:[%s727 + $0x4] sm:$0xf]
        %v730 = vld [vmem:[%s727 + $0x8] sm:$0xf]
        %v731 = vld [vmem:[%s727 + $0xc] sm:$0xf]
        %s732 = scalar_lea.vmem %s3, 1
        %v733 = vld [vmem:[%s732] sm:$0x1]
        %v735 = vperm.slane %v733, 0
        %v741 = vunpack.c.l.b16 %v728
        %v742 = vunpack.c.l.b16 %v729
        %v743 = vunpack.c.l.b16 %v730
        %v744 = vunpack.c.l.b16 %v731
        %v745 = vpack.c.b16 %v742, %v741
        %v746 = vpack.c.b16 %v744, %v743
        %749 = vmatpush.bf16.msra.mxu0 0
        %750 = vmatpush.bf16.msra.mxu0 0
        %751 = vmatpush.bf16.msra.mxu0 0
        %752 = vmatpush.bf16.msra.mxu0 0
        %753 = vmatpush.bf16.msra.mxu0 0
        %754 = vmatpush.bf16.msra.mxu0 0
        %755 = vmatpush.bf16.msra.mxu0 %v746
        %756 = vmatpush.bf16.msra.mxu0 %v745
        %757 = vmatmul.bf16.gmra.mxu0 %v583
        %v758 = vpop.f32.mrf.mxu0
        %v759 = vadd.f32 %v735, %v758
        %v760 = vpop.f32.mrf.mxu0
        %761 = vdwg.mxu0
        %s762 = scalar_lea.vmem %s4, 16
        %v763 = vld [vmem:[%s762] sm:$0xf]
        %v764 = vld [vmem:[%s762 + $0x4] sm:$0xf]
        %v765 = vld [vmem:[%s762 + $0x8] sm:$0xf]
        %v766 = vld [vmem:[%s762 + $0xc] sm:$0xf]
        %s767 = scalar_lea.vmem %s5, 1
        %v768 = vld [vmem:[%s767] sm:$0x1]
        %v770 = vperm.slane %v768, 0
        %v776 = vunpack.c.l.b16 %v763
        %v777 = vunpack.c.l.b16 %v764
        %v778 = vunpack.c.l.b16 %v765
        %v779 = vunpack.c.l.b16 %v766
        %v780 = vpack.c.b16 %v777, %v776
        %v781 = vpack.c.b16 %v779, %v778
        %784 = vmatpush.bf16.msra.mxu0 0
        %785 = vmatpush.bf16.msra.mxu0 0
        %786 = vmatpush.bf16.msra.mxu0 0
        %787 = vmatpush.bf16.msra.mxu0 0
        %788 = vmatpush.bf16.msra.mxu0 0
        %789 = vmatpush.bf16.msra.mxu0 0
        %790 = vmatpush.bf16.msra.mxu0 %v781
        %791 = vmatpush.bf16.msra.mxu0 %v780
        %792 = vmatmul.bf16.gmra.mxu0 %v583
        %v793 = vpop.f32.mrf.mxu0
        %v794 = vadd.f32 %v770, %v793
        %v795 = vpop.f32.mrf.mxu0
        %796 = vdwg.mxu0
        %s797 = scalar_lea.vmem %s6, 16
        %v798 = vld [vmem:[%s797] sm:$0xf]
        %v799 = vld [vmem:[%s797 + $0x4] sm:$0xf]
        %v800 = vld [vmem:[%s797 + $0x8] sm:$0xf]
        %v801 = vld [vmem:[%s797 + $0xc] sm:$0xf]
        %s802 = scalar_lea.vmem %s7, 1
        %v803 = vld [vmem:[%s802] sm:$0x1]
        %v805 = vperm.slane %v803, 0
        %v811 = vunpack.c.l.b16 %v798
        %v812 = vunpack.c.l.b16 %v799
        %v813 = vunpack.c.l.b16 %v800
        %v814 = vunpack.c.l.b16 %v801
        %v815 = vpack.c.b16 %v812, %v811
        %v816 = vpack.c.b16 %v814, %v813
        %819 = vmatpush.bf16.msra.mxu0 0
        %820 = vmatpush.bf16.msra.mxu0 0
        %821 = vmatpush.bf16.msra.mxu0 0
        %822 = vmatpush.bf16.msra.mxu0 0
        %823 = vmatpush.bf16.msra.mxu0 0
        %824 = vmatpush.bf16.msra.mxu0 0
        %825 = vmatpush.bf16.msra.mxu0 %v816
        %826 = vmatpush.bf16.msra.mxu0 %v815
        %827 = vmatmul.bf16.gmra.mxu0 %v583
        %v828 = vpop.f32.mrf.mxu0
        %v829 = vadd.f32 %v805, %v828
        %v830 = vpop.f32.mrf.mxu0
        %831 = vdwg.mxu0
        %v832 = vpack.c.bf16 %v759, %v759
        %v833 = vpack.c.bf16 %v794, %v794
        %v835 = vsel %vm666, %v832, 0
        %v838 = vsel %vm666, %v833, 0
        %840 = vmatpush.bf16.xpose.msra.mxu0 0
        %841 = vmatpush.bf16.xpose.msra.mxu0 0
        %842 = vmatpush.bf16.xpose.msra.mxu0 0
        %843 = vmatpush.bf16.xpose.msra.mxu0 0
        %844 = vmatpush.bf16.xpose.msra.mxu0 0
        %845 = vmatpush.bf16.xpose.msra.mxu0 0
        %846 = vmatpush.bf16.xpose.msra.mxu0 0
        %847 = vmatpush.bf16.xpose.msra.mxu0 %v838
        %848 = vmatmul.bf16.gmra.mxu0 %v835
        %v849 = vpop.f32.mrf.mxu0
        %v850 = vadd.f32 0.0, %v849
        %v851 = vpop.f32.mrf.mxu0
        %852 = vdwg.mxu0
        %v853 = vmul.f32 %v850, 0.25
        %v854 = vsel %vm688, %v853, -1000000.0
        %v855 = vsel %vm690, %v854, -inf
        %856 = vmax.xlane.f32.xlu0 %v855
        %v857 = vpop.xlane.xlu0 %856
        %v858 = vsub.f32 %v854, %v857
        %v859 = vmul.f32 %v858, 1.442695
        %v860 = vpow.pop %v859
        %v861 = vsel %vm690, %v860, 0.0
        %862 = vadd.xlane.f32.xlu0 %v861
        %v863 = vpop.xlane.xlu0 %862
        %v864 = vrcp.pop %v863
        %v865 = vmul.f32 %v860, %v864
        %v866 = vpack.c.bf16 %v865, %v865
        %v867 = vpack.c.bf16 %v829, %v829
        %v869 = vsel %vm690, %v866, 0
        %v872 = vsel %vm707, %v867, 0
        %874 = vmatpush.bf16.msra.mxu0 0
        %875 = vmatpush.bf16.msra.mxu0 0
        %876 = vmatpush.bf16.msra.mxu0 0
        %877 = vmatpush.bf16.msra.mxu0 0
        %878 = vmatpush.bf16.msra.mxu0 0
        %879 = vmatpush.bf16.msra.mxu0 0
        %880 = vmatpush.bf16.msra.mxu0 0
        %881 = vmatpush.bf16.msra.mxu0 %v872
        %882 = vmatmul.bf16.gmra.mxu0 %v869
        %v883 = vpop.f32.mrf.mxu0
        %v884 = vadd.f32 0.0, %v883
        %v885 = vpop.f32.mrf.mxu0
        %886 = vdwg.mxu0
        %v887 = vpack.c.bf16 %v884, %v884
        %s888 = scalar_lea.vmem %s8, 8
        %v889 = vld [vmem:[%s888] sm:$0xf]
        %v890 = vld [vmem:[%s888 + $0x4] sm:$0xf]
        %v893 = vunpack.c.l.b16 %v889
        %v894 = vunpack.c.l.b16 %v890
        %v895 = vpack.c.b16 %v894, %v893
        %v898 = vsel %vm666, %v887, 0
        %900 = vmatpush.bf16.msra.mxu0 0
        %901 = vmatpush.bf16.msra.mxu0 0
        %902 = vmatpush.bf16.msra.mxu0 0
        %903 = vmatpush.bf16.msra.mxu0 0
        %904 = vmatpush.bf16.msra.mxu0 0
        %905 = vmatpush.bf16.msra.mxu0 0
        %906 = vmatpush.bf16.msra.mxu0 0
        %907 = vmatpush.bf16.msra.mxu0 %v895
        %908 = vmatmul.bf16.gmra.mxu0 %v898
        %v909 = vpop.f32.mrf.mxu0
        %v910 = vadd.f32 0.0, %v909
        %v911 = vpop.f32.mrf.mxu0
        %912 = vdwg.mxu0
        %v915 = vunpack.c.l.b16 %v725
        %v916 = vunpack.c.l.b16 %v726
        %v917 = vpack.c.b16 %v916, %v915
        %v920 = vsel %vm666, %v724, 0
        %922 = vmatpush.bf16.msra.mxu0 0
        %923 = vmatpush.bf16.msra.mxu0 0
        %924 = vmatpush.bf16.msra.mxu0 0
        %925 = vmatpush.bf16.msra.mxu0 0
        %926 = vmatpush.bf16.msra.mxu0 0
        %927 = vmatpush.bf16.msra.mxu0 0
        %928 = vmatpush.bf16.msra.mxu0 0
        %929 = vmatpush.bf16.msra.mxu0 %v917
        %930 = vmatmul.bf16.gmra.mxu0 %v920
        %v931 = vpop.f32.mrf.mxu0
        %v932 = vadd.f32 %v910, %v931
        %v933 = vpop.f32.mrf.mxu0
        %934 = vdwg.mxu0
        %v935 = vld [vmem:[%s9] sm:$0x1]
        %v937 = vperm.slane %v935, 0
        %v939 = vadd.f32 %v932, %v937
        %v940 = vadd.f32 %v555, %v939
        %v941 = vld [vmem:[%s10] sm:$0x1]
        %v942 = vld [vmem:[%s11] sm:$0x1]
        %v943 = vsel %vm581, %v940, 0.0
        %944 = vadd.xlane.f32.xlu0 %v943
        %v945 = vpop.xlane.xlu0 %944
        %v946 = vrcp.pop 32.0
        %v947 = vmul.f32 32.0, %v946
        %v948 = vsub.f32 1.0, %v947
        %v949 = vmul.f32 %v946, %v948
        %v950 = vadd.f32 %v946, %v949
        %vm951 = vweird.f32 %v946
        %v952 = vsel %vm951, %v946, %v950
        %v953 = vmul.f32 %v945, %v952
        %v954 = vsub.f32 %v940, %v953
        %v955 = vmul.f32 %v954, %v954
        %v956 = vsel %vm581, %v955, 0.0
        %957 = vadd.xlane.f32.xlu0 %v956
        %v958 = vpop.xlane.xlu0 %957
        %v959 = vmul.f32 %v958, %v952
        %v960 = vadd.f32 %v959, 1e-05
        %v961 = vrsqrt.pop %v960
        %v962 = vmul.f32 %v961, %v960
        %v963 = vmul.f32 %v962, %v961
        %v964 = vmul.f32 0.5, %v963
        %v965 = vsub.f32 1.5, %v964
        %v966 = vmul.f32 %v961, %v965
        %vm967 = vweird.f32 %v960
        %vm968 = vweird.f32 %v961
        %vm969 = vmor %vm967, %vm968
        %v970 = vsel %vm969, %v961, %v966
        %v971 = vmul.f32 %v954, %v970
        %v973 = vperm.slane %v941, 0
        %v975 = vmul.f32 %v971, %v973
        %v977 = vperm.slane %v942, 0
        %v979 = vadd.f32 %v975, %v977
        %v980 = vpack.c.bf16 %v979, %v979
        %v981 = vld [vmem:[%s12] sm:$0xf]
        %v982 = vld [vmem:[%s12 + $0x4] sm:$0xf]
        %v983 = vld [vmem:[%s12 + $0x8] sm:$0xf]
        %v984 = vld [vmem:[%s12 + $0xc] sm:$0xf]
        %v985 = vld [vmem:[%s13] sm:$0x1]
        %v987 = vperm.slane %v985, 0
        %v993 = vunpack.c.l.b16 %v981
        %v994 = vunpack.c.l.b16 %v982
        %v995 = vunpack.c.l.b16 %v983
        %v996 = vunpack.c.l.b16 %v984
        %v997 = vpack.c.b16 %v994, %v993
        %v998 = vpack.c.b16 %v996, %v995
        %v1002 = vsel %vm581, %v980, 0
        %1004 = vmatpush.bf16.msra.mxu0 0
        %1005 = vmatpush.bf16.msra.mxu0 0
        %1006 = vmatpush.bf16.msra.mxu0 0
        %1007 = vmatpush.bf16.msra.mxu0 0
        %1008 = vmatpush.bf16.msra.mxu0 0
        %1009 = vmatpush.bf16.msra.mxu0 0
        %1010 = vmatpush.bf16.msra.mxu0 %v998
        %1011 = vmatpush.bf16.msra.mxu0 %v997
        %1012 = vmatmul.bf16.gmra.mxu0 %v1002
        %v1013 = vpop.f32.mrf.mxu0
        %v1014 = vadd.f32 %v987, %v1013
        %v1015 = vpop.f32.mrf.mxu0
        %1016 = vdwg.mxu0
        %v1017 = vmax.f32 %v1014, 0.0
        %v1018 = vpack.c.bf16 %v1017, %v1017
        %v1019 = vld [vmem:[%s14] sm:$0xf]
        %v1020 = vld [vmem:[%s14 + $0x4] sm:$0xf]
        %v1021 = vld [vmem:[%s14 + $0x8] sm:$0xf]
        %v1022 = vld [vmem:[%s14 + $0xc] sm:$0xf]
        %v1023 = vld [vmem:[%s14 + $0x10] sm:$0xf]
        %v1024 = vld [vmem:[%s14 + $0x14] sm:$0xf]
        %v1025 = vld [vmem:[%s14 + $0x18] sm:$0xf]
        %v1026 = vld [vmem:[%s14 + $0x1c] sm:$0xf]
        %v1027 = vld [vmem:[%s15] sm:$0x1]
        %v1029 = vperm.slane %v1027, 0
        %v1039 = vunpack.c.l.b16 %v1019
        %v1040 = vunpack.c.l.b16 %v1020
        %v1041 = vunpack.c.l.b16 %v1021
        %v1042 = vunpack.c.l.b16 %v1022
        %v1043 = vunpack.c.l.b16 %v1023
        %v1044 = vunpack.c.l.b16 %v1024
        %v1045 = vunpack.c.l.b16 %v1025
        %v1046 = vunpack.c.l.b16 %v1026
        %v1047 = vpack.c.b16 %v1040, %v1039
        %v1048 = vpack.c.b16 %v1042, %v1041
        %v1049 = vpack.c.b16 %v1044, %v1043
        %v1050 = vpack.c.b16 %v1046, %v1045
        %vm1055 = vcmask 523264
        %v1057 = vsel %vm1055, %v1018, 0
        %1059 = vmatpush.bf16.msra.mxu0 0
        %1060 = vmatpush.bf16.msra.mxu0 0
        %1061 = vmatpush.bf16.msra.mxu0 0
        %1062 = vmatpush.bf16.msra.mxu0 0
        %1063 = vmatpush.bf16.msra.mxu0 %v1050
        %1064 = vmatpush.bf16.msra.mxu0 %v1049
        %1065 = vmatpush.bf16.msra.mxu0 %v1048
        %1066 = vmatpush.bf16.msra.mxu0 %v1047
        %1067 = vmatmul.bf16.gmra.mxu0 %v1057
        %v1068 = vpop.f32.mrf.mxu0
        %v1069 = vadd.f32 %v1029, %v1068
        %v1070 = vpop.f32.mrf.mxu0
        %1071 = vdwg.mxu0
        %v1072 = vadd.f32 %v979, %v1069
        %v1073 = vld [vmem:[%s16] sm:$0x1]
        %v1074 = vld [vmem:[%s17] sm:$0x1]
        %v1075 = vsel %vm581, %v1072, 0.0
        %1076 = vadd.xlane.f32.xlu0 %v1075
        %v1077 = vpop.xlane.xlu0 %1076
        %v1078 = vmul.f32 %v1077, %v952
        %v1079 = vsub.f32 %v1072, %v1078
        %v1080 = vmul.f32 %v1079, %v1079
        %v1081 = vsel %vm581, %v1080, 0.0
        %1082 = vadd.xlane.f32.xlu0 %v1081
        %v1083 = vpop.xlane.xlu0 %1082
        %v1084 = vmul.f32 %v1083, %v952
        %v1085 = vadd.f32 %v1084, 1e-05
        %v1086 = vrsqrt.pop %v1085
        %v1087 = vmul.f32 %v1086, %v1085
        %v1088 = vmul.f32 %v1087, %v1086
        %v1089 = vmul.f32 0.5, %v1088
        %v1090 = vsub.f32 1.5, %v1089
        %v1091 = vmul.f32 %v1086, %v1090
        %vm1092 = vweird.f32 %v1085
        %vm1093 = vweird.f32 %v1086
        %vm1094 = vmor %vm1092, %vm1093
        %v1095 = vsel %vm1094, %v1086, %v1091
        %v1096 = vmul.f32 %v1079, %v1095
        %v1098 = vperm.slane %v1073, 0
        %v1100 = vmul.f32 %v1096, %v1098
        %v1102 = vperm.slane %v1074, 0
        %v1104 = vadd.f32 %v1100, %v1102
        %1105 = vst.msk [vmem:[%s548] sm:$0xff] %vm581, %v1104
        %s1106 = sand.u32 %s410, 1
        %s1107 = scalar_lea.sflag [#allocation5], %s1106
        %s1108 = sand.u32 %s410, 1
        %s1109 = smul.addr %s1108, 8
        %s1110 = scalar_lea.vmem [#allocation4], %s1109
        // Predicated region
        $region89: #{tpu_custom_call.1} parent=87 // pred_check
          %p1111 = pneg %p420
        $region90: #{tpu_custom_call.1} parent=87 // pred_check_branch
          %1113 = sbr.rel (%p1111) target = $region92
        $region91: #{tpu_custom_call.1} parent=87 // pred_region
          %1115 = vsyncadd %s1107, 0
          %s1116 = smul.addr %s40, 8
          %s1117 = scalar_lea.hbm %s18, %s1116
          %s1119 = sshll.u32 %s1110, 4
          %s1120 = int_to_ptr.vmem [resolvable:$true] %s1119
          %s1121 = sshll.u32 %s1117, 4
          %s1122 = int_to_ptr.hbm [resolvable:$true] %s1121
          %1124 = dma.vmem_to_hbm [thread:$0]  %s1120, 128, %s1122, %s1107
        $region92: #{tpu_custom_call.1} parent=87 // pred_fallthru
          _
      $region88: #{tpu_custom_call.1} parent=5 // pred_fallthru
        _
      %p1125 = scmp.le.s32.totalorder 2, %s35
      // Predicated region
      $region93: #{tpu_custom_call.1} parent=5 // pred_check
        %p1126 = pneg %p1125
      $region94: #{tpu_custom_call.1} parent=5 // pred_check_branch
        %1128 = sbr.rel (%p1126) target = $region96
      $region95: #{tpu_custom_call.1} parent=5 // pred_region
        %s1129 = ssub.s32 %s35, 2
        // Predicated region
        $region97: #{tpu_custom_call.1} parent=95 // pred_check
          %p1130 = pneg %p426
        $region98: #{tpu_custom_call.1} parent=95 // pred_check_branch
          %1132 = sbr.rel (%p1130) target = $region100
        $region99: #{tpu_custom_call.1} parent=95 // pred_region
          %s1133 = sand.u32 %s411, 1
          %s1134 = scalar_lea.sflag [#allocation5], %s1133
          %s1135 = sand.u32 %s411, 1
          %s1136 = smul.addr %s1135, 8
          %s1137 = scalar_lea.vmem [#allocation4], %s1136
          %1139 = dma.done %s1134, 128
        $region100: #{tpu_custom_call.1} parent=95 // pred_fallthru
          _
      $region96: #{tpu_custom_call.1} parent=5 // pred_fallthru
        _
    $region6: #{tpu_custom_call.1} parent=1 // loop_footer
      %s39 = sadd.s32 1, %s35
    $region7: #{tpu_custom_call.1} parent=1 // loop_footer_branch
      %34 = sbr.rel target = $region3
    $region8: #{tpu_custom_call.1} parent=1 // loop_exit
      _
    %1140 = vsyncpa [#allocation5], 1
    %s1141 = scalar_lea.sflag [#allocation5], 1
    %1142 = vsyncpa %s1141, 1

</llo_original>
